<compile_context>
chip_gen: v7x
topology: tpu7x:2x2x1
jax: 0.10.0
libtpu: 0.0.40
codegen_flags: <defaults>
</compile_context>

<pallas_src>
import functools

import jax
import jax.numpy as jnp
from jax.experimental import pallas as pl
from jax.experimental.pallas import tpu as pltpu

REG_MAX = 4            # simplified DFL reg_max
NC = 3                 # number of classes
NO = 4 * REG_MAX + NC  # per-scale output channels = 19


# ----------------------------------------------------------------------------
# Tile selection: lane-dense (multiple of 128), prefer >=2 grid steps so the
# grid can shard across v7x's 2 TensorCores; otherwise the fattest tile that
# divides M (cheapest on single-TC v5e/v6e). Tiles here are only a few KiB so
# VMEM limits (64 MiB on v7x, 128 MiB on v5e/v6e) are never a concern.
# ----------------------------------------------------------------------------
def _pick_lane_tile(m):
    for cand in (512, 256, 128):
        if m % cand == 0 and m // cand >= 2:
            return cand
    for cand in (512, 256, 128):
        if m % cand == 0:
            return cand
    return m


# ----------------------------------------------------------------------------
# Pallas kernel 1: transposed conv-as-matmul  out(Cout, tn) = act(W @ X + b)
#   X tile   : (K, tn)   f32 -> cast bf16 in-kernel
#   W        : (Cout, K) bf16 (resident across grid steps)
#   b        : (Cout, 1) f32
# Output lane dim = tn (>=128) -> unmasked, lane-dense stores.
# ----------------------------------------------------------------------------
def _convt_kernel(x_ref, w_ref, b_ref, o_ref, *, act):
    x = x_ref[...].astype(jnp.bfloat16)
    acc = jnp.dot(w_ref[...], x, preferred_element_type=jnp.float32)
    acc = acc + b_ref[...]
    if act:  # SiLU
        acc = acc * jax.nn.sigmoid(acc)
    o_ref[...] = acc.astype(o_ref.dtype)


def matmul_t(w_t, b, x_t, act=True):
    """out (Nout, M) = act(w_t (Nout,K) @ x_t (K,M) + b (Nout,1))."""
    nout, k = w_t.shape
    _, m = x_t.shape
    tn = _pick_lane_tile(m)
    grid = (m // tn,)
    return pl.pallas_call(
        functools.partial(_convt_kernel, act=act),
        out_shape=jax.ShapeDtypeStruct((nout, m), jnp.float32),
        grid=grid,
        in_specs=[
            pl.BlockSpec((k, tn), lambda i: (0, i)),      # activations (pipelined)
            pl.BlockSpec((nout, k), lambda i: (0, 0)),    # weights (resident)
            pl.BlockSpec((nout, 1), lambda i: (0, 0)),    # bias (resident)
        ],
        out_specs=pl.BlockSpec((nout, tn), lambda i: (0, i)),
        compiler_params=pltpu.CompilerParams(
            dimension_semantics=("parallel",)),
    )(x_t, w_t, b)


# ----------------------------------------------------------------------------
# Pallas kernel 2: fused DualStreamDetect head, one kernel per scale.
#   h   = SiLU(Fw @ wide + Fn @ narrow + fb)     (== 1x1 fuse conv on concat)
#   out = Dw @ h + db                            (== concatenated box|cls convs)
# Intermediate h never leaves vregs/VMEM; output (NO, tn) is lane-dense.
# ----------------------------------------------------------------------------
def _head_kernel(w_ref, n_ref, fww_ref, fwn_ref, fb_ref, dw_ref, db_ref, o_ref):
    wt = w_ref[...].astype(jnp.bfloat16)
    nt = n_ref[...].astype(jnp.bfloat16)
    h = (jnp.dot(fww_ref[...], wt, preferred_element_type=jnp.float32)
         + jnp.dot(fwn_ref[...], nt, preferred_element_type=jnp.float32)
         + fb_ref[...])
    h = h * jax.nn.sigmoid(h)                      # SiLU in f32
    h = h.astype(jnp.bfloat16)
    out = jnp.dot(dw_ref[...], h, preferred_element_type=jnp.float32)
    out = out + db_ref[...]
    o_ref[...] = out.astype(o_ref.dtype)


def head_fused(wide, narrow, fww_t, fwn_t, fb, dw_t, db):
    c, m = wide.shape
    no = dw_t.shape[0]
    tn = _pick_lane_tile(m)
    grid = (m // tn,)
    return pl.pallas_call(
        _head_kernel,
        out_shape=jax.ShapeDtypeStruct((no, m), jnp.float32),
        grid=grid,
        in_specs=[
            pl.BlockSpec((c, tn), lambda i: (0, i)),   # wide features
            pl.BlockSpec((c, tn), lambda i: (0, i)),   # narrow features
            pl.BlockSpec((c, c), lambda i: (0, 0)),    # fuse W (wide half)
            pl.BlockSpec((c, c), lambda i: (0, 0)),    # fuse W (narrow half)
            pl.BlockSpec((c, 1), lambda i: (0, 0)),    # fuse bias
            pl.BlockSpec((no, c), lambda i: (0, 0)),   # box|cls combined W
            pl.BlockSpec((no, 1), lambda i: (0, 0)),   # box|cls combined bias
        ],
        out_specs=pl.BlockSpec((no, tn), lambda i: (0, i)),
        compiler_params=pltpu.CompilerParams(
            dimension_semantics=("parallel",)),
    )(wide, narrow, fww_t, fwn_t, fb, dw_t, db)


# ----------------------------------------------------------------------------
# JAX glue: channel-major im2col for 3x3 convs (patch extraction only).
# Features live as (C, N, H, W); patches are (9*C, N*Ho*Wo) so the matmul
# output (Cout, N*Ho*Wo) keeps the big dim in the lane axis.
# ----------------------------------------------------------------------------
def im2col_cm(x_cnhw, ksize=3, stride=1, pad=1):
    c, n, h, w = x_cnhw.shape
    xp = jnp.pad(x_cnhw, ((0, 0), (0, 0), (pad, pad), (pad, pad)))
    ho = (h + 2 * pad - ksize) // stride + 1
    wo = (w + 2 * pad - ksize) // stride + 1
    taps = []
    for ki in range(ksize):
        for kj in range(ksize):
            taps.append(xp[:, :, ki:ki + stride * ho:stride,
                              kj:kj + stride * wo:stride])
    patches = jnp.concatenate(taps, axis=0)        # (K*K*C, N, Ho, Wo)
    return patches.reshape(ksize * ksize * c, n * ho * wo), (n, ho, wo)


def conv2d_cm(x_cnhw, w_t, b, stride=1, act=True):
    """3x3 conv, pad=1, channel-major. w_t:(Cout, 9*Cin) bf16, b:(Cout,1)."""
    patches, (n, ho, wo) = im2col_cm(x_cnhw, ksize=3, stride=stride, pad=1)
    y = matmul_t(w_t, b, patches, act=act)         # (Cout, N*Ho*Wo)
    return y.reshape(w_t.shape[0], n, ho, wo)


# ----------------------------------------------------------------------------
# Parameters: raw init (matches previous revision's synthetic module), then a
# one-time prep step (transpose / concat / bf16 cast) outside the jit path.
# ----------------------------------------------------------------------------
def init_params(key):
    ks = jax.random.split(key, 12)
    chs = (8, 16)  # per-scale backbone channels (ch of the head)
    p = {
        "conv1_w": 0.1 * jax.random.normal(ks[0], (3, 3, 4, 8), jnp.float32),
        "conv1_b": 0.01 * jax.random.normal(ks[1], (8,), jnp.float32),
        "conv2_w": 0.1 * jax.random.normal(ks[2], (3, 3, 8, 16), jnp.float32),
        "conv2_b": 0.01 * jax.random.normal(ks[3], (16,), jnp.float32),
        "fuse_w": [], "fuse_b": [], "box_w": [], "box_b": [],
        "cls_w": [], "cls_b": [],
    }
    kidx = 4
    for c in chs:
        kf, kb, kc, _ = jax.random.split(ks[kidx], 4)
        p["fuse_w"].append(0.1 * jax.random.normal(kf, (2 * c, c), jnp.float32))
        p["fuse_b"].append(jnp.zeros((c,), jnp.float32))
        p["box_w"].append(0.1 * jax.random.normal(kb, (c, 4 * REG_MAX), jnp.float32))
        p["box_b"].append(jnp.zeros((4 * REG_MAX,), jnp.float32))
        p["cls_w"].append(0.1 * jax.random.normal(kc, (c, NC), jnp.float32))
        p["cls_b"].append(jnp.zeros((NC,), jnp.float32))
        kidx += 1
    return p


def prepare_params(p):
    """One-time prep: transposed bf16 weights, fused box|cls weights, biases."""
    bf = jnp.bfloat16
    chs = (8, 16)
    q = {
        "conv1_wt": p["conv1_w"].reshape(-1, 8).T.astype(bf),     # (8, 36)
        "conv1_b": p["conv1_b"].reshape(8, 1),
        "conv2_wt": p["conv2_w"].reshape(-1, 16).T.astype(bf),    # (16, 72)
        "conv2_b": p["conv2_b"].reshape(16, 1),
        "fuse_ww_t": [], "fuse_wn_t": [], "fuse_b": [],
        "det_wt": [], "det_b": [],
    }
    for i, c in enumerate(chs):
        fw = p["fuse_w"][i]                               # (2C, C)
        q["fuse_ww_t"].append(fw[:c].T.astype(bf))        # (C, C)
        q["fuse_wn_t"].append(fw[c:].T.astype(bf))        # (C, C)
        q["fuse_b"].append(p["fuse_b"][i].reshape(c, 1))
        dw = jnp.concatenate([p["box_w"][i], p["cls_w"][i]], axis=1)  # (C, NO)
        db = jnp.concatenate([p["box_b"][i], p["cls_b"][i]])          # (NO,)
        q["det_wt"].append(dw.T.astype(bf))               # (NO, C)
        q["det_b"].append(db.reshape(NO, 1))
    return q


# ----------------------------------------------------------------------------
# SimpleDualStreamYOLO forward (synthetic backbone + DualStreamDetect head)
# ----------------------------------------------------------------------------
def extract_features_cm(x_cnhw, p):
    """Shared backbone -> 2-scale feature pyramid, channel-major (C,N,H,W)."""
    f1 = conv2d_cm(x_cnhw, p["conv1_wt"], p["conv1_b"], stride=1, act=True)
    f2 = conv2d_cm(f1, p["conv2_wt"], p["conv2_b"], stride=2, act=True)
    return [f1, f2]


def dual_stream_detect_cm(wide_flats, narrow_flats, shapes, p):
    """Fused DualStreamDetect (concat fusion); returns per-scale (N, NO, H, W)."""
    outs = []
    for i in range(len(wide_flats)):
        nb, h, w = shapes[i]
        out_t = head_fused(wide_flats[i], narrow_flats[i],
                           p["fuse_ww_t"][i], p["fuse_wn_t"][i], p["fuse_b"][i],
                           p["det_wt"][i], p["det_b"][i])      # (NO, nb*h*w)
        outs.append(out_t.reshape(NO, nb, h, w).transpose(1, 0, 2, 3))
    return outs


def simple_dual_stream_yolo(x, params):
    """x: tuple (wide_img, narrow_img) in NCHW, or a single NCHW tensor."""
    if isinstance(x, tuple) and len(x) == 2:
        n_wide = x[0].shape[0]
        # Batch both streams through the shared backbone in ONE pass.
        both = jnp.concatenate([x[0], x[1]], axis=0).astype(jnp.float32)
        x_cm = jnp.transpose(both, (1, 0, 2, 3))       # (C, 2N, H, W)
        feats = extract_features_cm(x_cm, params)
        wides, narrows, shapes = [], [], []
        for f in feats:
            c, nb, h, w = f.shape
            flat = f.reshape(c, nb * h * w)
            mh = n_wide * h * w
            wides.append(flat[:, :mh])
            narrows.append(flat[:, mh:])
            shapes.append((n_wide, h, w))
        return dual_stream_detect_cm(wides, narrows, shapes, params)

    # single-stream path: head sees the same features for both streams
    # TODO(synk): the real single-stream path uses the original YOLO Detect head.
    x_cm = jnp.transpose(x.astype(jnp.float32), (1, 0, 2, 3))
    feats = extract_features_cm(x_cm, params)
    wides, narrows, shapes = [], [], []
    for f in feats:
        c, nb, h, w = f.shape
        flat = f.reshape(c, nb * h * w)
        wides.append(flat)
        narrows.append(flat)
        shapes.append((nb, h, w))
    return dual_stream_detect_cm(wides, narrows, shapes, params)


if __name__ == "__main__":
    key = jax.random.PRNGKey(0)
    kp, kw, kn = jax.random.split(key, 3)
    params = prepare_params(init_params(kp))

    # PyTorch-convention NCHW inputs: batch=2, channels=4, spatial=16
    wide_img = jax.random.normal(kw, (2, 4, 16, 16), jnp.float32)
    narrow_img = jax.random.normal(kn, (2, 4, 16, 16), jnp.float32)

    fwd = jax.jit(lambda w, n: simple_dual_stream_yolo((w, n), params))
    outs = jax.block_until_ready(fwd(wide_img, narrow_img))

    # YOLO Detect training-style per-scale maps, PyTorch NCHW convention.
    assert outs[0].shape == (2, NO, 16, 16)
    assert outs[1].shape == (2, NO, 8, 8)
    assert all(bool(jnp.isfinite(o).all()) for o in outs)
    print("KERNEL_OK")
</pallas_src>

<mosaic_0001>
module attributes {stable_mosaic.version = 11 : i64} {
  func.func @_convt_kernel(%arg0: i32, %arg1: memref<36x512xf32, #tpu.memory_space<vmem>>, %arg2: memref<8x36xbf16, #tpu.memory_space<vmem>>, %arg3: memref<8x1xf32, #tpu.memory_space<vmem>>, %arg4: memref<8x512xf32, #tpu.memory_space<vmem>>) attributes {dimension_semantics = [#tpu.dimension_semantics<parallel>], iteration_bounds = array<i64: 2>, scalar_prefetch = 0 : i64, scratch_operands = 0 : i64, tpu.core_type = #tpu.core_type<tc>, window_params = [{transform_indices = @transform_0, window_bounds = array<i64: 36, 512>}, {pipeline_mode = #tpu.pipeline_mode<synchronous>, transform_indices = @transform_1, window_bounds = array<i64: 8, 36>}, {pipeline_mode = #tpu.pipeline_mode<synchronous>, transform_indices = @transform_2, window_bounds = array<i64: 8, 1>}, {transform_indices = @transform_3, window_bounds = array<i64: 8, 512>}]} {
    %c0 = arith.constant 0 : index
    %c0_0 = arith.constant 0 : index
    %0 = vector.load %arg1[%c0, %c0_0] : memref<36x512xf32, #tpu.memory_space<vmem>>, vector<36x512xf32>
    %1 = arith.truncf %0 : vector<36x512xf32> to vector<36x512xbf16>
    %c0_1 = arith.constant 0 : index
    %c0_2 = arith.constant 0 : index
    %2 = vector.load %arg2[%c0_1, %c0_2] : memref<8x36xbf16, #tpu.memory_space<vmem>>, vector<8x36xbf16>
    %cst = arith.constant dense<0.000000e+00> : vector<8x512xf32>
    %3 = tpu.matmul %2, %1, %cst {dimension_numbers = #tpu.dot_dimension_numbers<[1], [0], [0], [1], [0, 0, 1, 1], [], []>} : vector<8x36xbf16>, vector<36x512xbf16>, vector<8x512xf32> -> vector<8x512xf32>
    %c0_3 = arith.constant 0 : index
    %c0_4 = arith.constant 0 : index
    %4 = vector.load %arg3[%c0_3, %c0_4] : memref<8x1xf32, #tpu.memory_space<vmem>>, vector<8x1xf32>
    %5 = vector.broadcast %4 : vector<8x1xf32> to vector<8x512xf32>
    %6 = arith.addf %3, %5 : vector<8x512xf32>
    %7 = arith.negf %6 : vector<8x512xf32>
    %8 = math.exp %7 : vector<8x512xf32>
    %cst_5 = arith.constant 1.000000e+00 : f32
    %9 = vector.broadcast %cst_5 : f32 to vector<8x512xf32>
    %10 = arith.addf %9, %8 : vector<8x512xf32>
    %11 = arith.divf %9, %10 : vector<8x512xf32>
    %12 = arith.mulf %6, %11 : vector<8x512xf32>
    %c0_6 = arith.constant 0 : index
    %c0_7 = arith.constant 0 : index
    %13 = vector.load %arg4[%c0_6, %c0_7] : memref<8x512xf32, #tpu.memory_space<vmem>>, vector<8x512xf32>
    tpu.vector_store %arg4[%c0_6, %c0_7], %12 {strides = array<i32>} : memref<8x512xf32, #tpu.memory_space<vmem>>, vector<8x512xf32>,
    return
  }
  func.func @transform_0(%arg0: i32) -> (i32, i32) {
    %c0_i32 = arith.constant 0 : i32
    %c0_i32_0 = arith.constant 0 : i32
    return %c0_i32, %arg0 : i32, i32
  }
  func.func @transform_1(%arg0: i32) -> (i32, i32) {
    %c0_i32 = arith.constant 0 : i32
    %c0_i32_0 = arith.constant 0 : i32
    %c0_i32_1 = arith.constant 0 : i32
    return %c0_i32, %c0_i32_0 : i32, i32
  }
  func.func @transform_2(%arg0: i32) -> (i32, i32) {
    %c0_i32 = arith.constant 0 : i32
    %c0_i32_0 = arith.constant 0 : i32
    %c0_i32_1 = arith.constant 0 : i32
    return %c0_i32, %c0_i32_0 : i32, i32
  }
  func.func @transform_3(%arg0: i32) -> (i32, i32) {
    %c0_i32 = arith.constant 0 : i32
    %c0_i32_0 = arith.constant 0 : i32
    return %c0_i32, %arg0 : i32, i32
  }
}

module attributes {stable_mosaic.version = 11 : i64} {
  func.func @_convt_kernel(%arg0: i32, %arg1: memref<72x128xf32, #tpu.memory_space<vmem>>, %arg2: memref<16x72xbf16, #tpu.memory_space<vmem>>, %arg3: memref<16x1xf32, #tpu.memory_space<vmem>>, %arg4: memref<16x128xf32, #tpu.memory_space<vmem>>) attributes {dimension_semantics = [#tpu.dimension_semantics<parallel>], iteration_bounds = array<i64: 2>, scalar_prefetch = 0 : i64, scratch_operands = 0 : i64, tpu.core_type = #tpu.core_type<tc>, window_params = [{transform_indices = @transform_0, window_bounds = array<i64: 72, 128>}, {pipeline_mode = #tpu.pipeline_mode<synchronous>, transform_indices = @transform_1, window_bounds = array<i64: 16, 72>}, {pipeline_mode = #tpu.pipeline_mode<synchronous>, transform_indices = @transform_2, window_bounds = array<i64: 16, 1>}, {transform_indices = @transform_3, window_bounds = array<i64: 16, 128>}]} {
    %c0 = arith.constant 0 : index
    %c0_0 = arith.constant 0 : index
    %0 = vector.load %arg1[%c0, %c0_0] : memref<72x128xf32, #tpu.memory_space<vmem>>, vector<72x128xf32>
    %1 = arith.truncf %0 : vector<72x128xf32> to vector<72x128xbf16>
    %c0_1 = arith.constant 0 : index
    %c0_2 = arith.constant 0 : index
    %2 = vector.load %arg2[%c0_1, %c0_2] : memref<16x72xbf16, #tpu.memory_space<vmem>>, vector<16x72xbf16>
    %cst = arith.constant dense<0.000000e+00> : vector<16x128xf32>
    %3 = tpu.matmul %2, %1, %cst {dimension_numbers = #tpu.dot_dimension_numbers<[1], [0], [0], [1], [0, 0, 1, 1], [], []>} : vector<16x72xbf16>, vector<72x128xbf16>, vector<16x128xf32> -> vector<16x128xf32>
    %c0_3 = arith.constant 0 : index
    %c0_4 = arith.constant 0 : index
    %4 = vector.load %arg3[%c0_3, %c0_4] : memref<16x1xf32, #tpu.memory_space<vmem>>, vector<16x1xf32>
    %5 = vector.broadcast %4 : vector<16x1xf32> to vector<16x128xf32>
    %6 = arith.addf %3, %5 : vector<16x128xf32>
    %7 = arith.negf %6 : vector<16x128xf32>
    %8 = math.exp %7 : vector<16x128xf32>
    %cst_5 = arith.constant 1.000000e+00 : f32
    %9 = vector.broadcast %cst_5 : f32 to vector<16x128xf32>
    %10 = arith.addf %9, %8 : vector<16x128xf32>
    %11 = arith.divf %9, %10 : vector<16x128xf32>
    %12 = arith.mulf %6, %11 : vector<16x128xf32>
    %c0_6 = arith.constant 0 : index
    %c0_7 = arith.constant 0 : index
    %13 = vector.load %arg4[%c0_6, %c0_7] : memref<16x128xf32, #tpu.memory_space<vmem>>, vector<16x128xf32>
    tpu.vector_store %arg4[%c0_6, %c0_7], %12 {strides = array<i32>} : memref<16x128xf32, #tpu.memory_space<vmem>>, vector<16x128xf32>,
    return
  }
  func.func @transform_0(%arg0: i32) -> (i32, i32) {
    %c0_i32 = arith.constant 0 : i32
    %c0_i32_0 = arith.constant 0 : i32
    return %c0_i32, %arg0 : i32, i32
  }
  func.func @transform_1(%arg0: i32) -> (i32, i32) {
    %c0_i32 = arith.constant 0 : i32
    %c0_i32_0 = arith.constant 0 : i32
    %c0_i32_1 = arith.constant 0 : i32
    return %c0_i32, %c0_i32_0 : i32, i32
  }
  func.func @transform_2(%arg0: i32) -> (i32, i32) {
    %c0_i32 = arith.constant 0 : i32
    %c0_i32_0 = arith.constant 0 : i32
    %c0_i32_1 = arith.constant 0 : i32
    return %c0_i32, %c0_i32_0 : i32, i32
  }
  func.func @transform_3(%arg0: i32) -> (i32, i32) {
    %c0_i32 = arith.constant 0 : i32
    %c0_i32_0 = arith.constant 0 : i32
    return %c0_i32, %arg0 : i32, i32
  }
}

module attributes {stable_mosaic.version = 11 : i64} {
  func.func @_head_kernel(%arg0: i32, %arg1: memref<16x128xf32, #tpu.memory_space<vmem>>, %arg2: memref<16x128xf32, #tpu.memory_space<vmem>>, %arg3: memref<16x16xbf16, #tpu.memory_space<vmem>>, %arg4: memref<16x16xbf16, #tpu.memory_space<vmem>>, %arg5: memref<16x1xf32, #tpu.memory_space<vmem>>, %arg6: memref<19x16xbf16, #tpu.memory_space<vmem>>, %arg7: memref<19x1xf32, #tpu.memory_space<vmem>>, %arg8: memref<19x128xf32, #tpu.memory_space<vmem>>) attributes {dimension_semantics = [#tpu.dimension_semantics<parallel>], iteration_bounds = array<i64: 1>, scalar_prefetch = 0 : i64, scratch_operands = 0 : i64, tpu.core_type = #tpu.core_type<tc>, window_params = [{transform_indices = @transform_0, window_bounds = array<i64: 16, 128>}, {transform_indices = @transform_1, window_bounds = array<i64: 16, 128>}, {pipeline_mode = #tpu.pipeline_mode<synchronous>, transform_indices = @transform_2, window_bounds = array<i64: 16, 16>}, {pipeline_mode = #tpu.pipeline_mode<synchronous>, transform_indices = @transform_3, window_bounds = array<i64: 16, 16>}, {pipeline_mode = #tpu.pipeline_mode<synchronous>, transform_indices = @transform_4, window_bounds = array<i64: 16, 1>}, {pipeline_mode = #tpu.pipeline_mode<synchronous>, transform_indices = @transform_5, window_bounds = array<i64: 19, 16>}, {pipeline_mode = #tpu.pipeline_mode<synchronous>, transform_indices = @transform_6, window_bounds = array<i64: 19, 1>}, {transform_indices = @transform_7, window_bounds = array<i64: 19, 128>}]} {
    %c0 = arith.constant 0 : index
    %c0_0 = arith.constant 0 : index
    %0 = vector.load %arg1[%c0, %c0_0] : memref<16x128xf32, #tpu.memory_space<vmem>>, vector<16x128xf32>
    %1 = arith.truncf %0 : vector<16x128xf32> to vector<16x128xbf16>
    %c0_1 = arith.constant 0 : index
    %c0_2 = arith.constant 0 : index
    %2 = vector.load %arg2[%c0_1, %c0_2] : memref<16x128xf32, #tpu.memory_space<vmem>>, vector<16x128xf32>
    %3 = arith.truncf %2 : vector<16x128xf32> to vector<16x128xbf16>
    %c0_3 = arith.constant 0 : index
    %c0_4 = arith.constant 0 : index
    %4 = vector.load %arg3[%c0_3, %c0_4] : memref<16x16xbf16, #tpu.memory_space<vmem>>, vector<16x16xbf16>
    %cst = arith.constant dense<0.000000e+00> : vector<16x128xf32>
    %5 = tpu.matmul %4, %1, %cst {dimension_numbers = #tpu.dot_dimension_numbers<[1], [0], [0], [1], [0, 0, 1, 1], [], []>} : vector<16x16xbf16>, vector<16x128xbf16>, vector<16x128xf32> -> vector<16x128xf32>
    %c0_5 = arith.constant 0 : index
    %c0_6 = arith.constant 0 : index
    %6 = vector.load %arg4[%c0_5, %c0_6] : memref<16x16xbf16, #tpu.memory_space<vmem>>, vector<16x16xbf16>
    %cst_7 = arith.constant dense<0.000000e+00> : vector<16x128xf32>
    %7 = tpu.matmul %6, %3, %cst_7 {dimension_numbers = #tpu.dot_dimension_numbers<[1], [0], [0], [1], [0, 0, 1, 1], [], []>} : vector<16x16xbf16>, vector<16x128xbf16>, vector<16x128xf32> -> vector<16x128xf32>
    %8 = arith.addf %5, %7 : vector<16x128xf32>
    %c0_8 = arith.constant 0 : index
    %c0_9 = arith.constant 0 : index
    %9 = vector.load %arg5[%c0_8, %c0_9] : memref<16x1xf32, #tpu.memory_space<vmem>>, vector<16x1xf32>
    %10 = vector.broadcast %9 : vector<16x1xf32> to vector<16x128xf32>
    %11 = arith.addf %8, %10 : vector<16x128xf32>
    %12 = arith.negf %11 : vector<16x128xf32>
    %13 = math.exp %12 : vector<16x128xf32>
    %cst_10 = arith.constant 1.000000e+00 : f32
    %14 = vector.broadcast %cst_10 : f32 to vector<16x128xf32>
    %15 = arith.addf %14, %13 : vector<16x128xf32>
    %16 = arith.divf %14, %15 : vector<16x128xf32>
    %17 = arith.mulf %11, %16 : vector<16x128xf32>
    %18 = arith.truncf %17 : vector<16x128xf32> to vector<16x128xbf16>
    %c0_11 = arith.constant 0 : index
    %c0_12 = arith.constant 0 : index
    %19 = vector.load %arg6[%c0_11, %c0_12] : memref<19x16xbf16, #tpu.memory_space<vmem>>, vector<19x16xbf16>
    %cst_13 = arith.constant dense<0.000000e+00> : vector<19x128xf32>
    %20 = tpu.matmul %19, %18, %cst_13 {dimension_numbers = #tpu.dot_dimension_numbers<[1], [0], [0], [1], [0, 0, 1, 1], [], []>} : vector<19x16xbf16>, vector<16x128xbf16>, vector<19x128xf32> -> vector<19x128xf32>
    %c0_14 = arith.constant 0 : index
    %c0_15 = arith.constant 0 : index
    %21 = vector.load %arg7[%c0_14, %c0_15] : memref<19x1xf32, #tpu.memory_space<vmem>>, vector<19x1xf32>
    %22 = vector.broadcast %21 : vector<19x1xf32> to vector<19x128xf32>
    %23 = arith.addf %20, %22 : vector<19x128xf32>
    %c0_16 = arith.constant 0 : index
    %c0_17 = arith.constant 0 : index
    %24 = vector.load %arg8[%c0_16, %c0_17] : memref<19x128xf32, #tpu.memory_space<vmem>>, vector<19x128xf32>
    tpu.vector_store %arg8[%c0_16, %c0_17], %23 {strides = array<i32>} : memref<19x128xf32, #tpu.memory_space<vmem>>, vector<19x128xf32>,
    return
  }
  func.func @transform_0(%arg0: i32) -> (i32, i32) {
    %c0_i32 = arith.constant 0 : i32
    %c0_i32_0 = arith.constant 0 : i32
    return %c0_i32, %arg0 : i32, i32
  }
  func.func @transform_1(%arg0: i32) -> (i32, i32) {
    %c0_i32 = arith.constant 0 : i32
    %c0_i32_0 = arith.constant 0 : i32
    return %c0_i32, %arg0 : i32, i32
  }
  func.func @transform_2(%arg0: i32) -> (i32, i32) {
    %c0_i32 = arith.constant 0 : i32
    %c0_i32_0 = arith.constant 0 : i32
    %c0_i32_1 = arith.constant 0 : i32
    return %c0_i32, %c0_i32_0 : i32, i32
  }
  func.func @transform_3(%arg0: i32) -> (i32, i32) {
    %c0_i32 = arith.constant 0 : i32
    %c0_i32_0 = arith.constant 0 : i32
    %c0_i32_1 = arith.constant 0 : i32
    return %c0_i32, %c0_i32_0 : i32, i32
  }
  func.func @transform_4(%arg0: i32) -> (i32, i32) {
    %c0_i32 = arith.constant 0 : i32
    %c0_i32_0 = arith.constant 0 : i32
    %c0_i32_1 = arith.constant 0 : i32
    return %c0_i32, %c0_i32_0 : i32, i32
  }
  func.func @transform_5(%arg0: i32) -> (i32, i32) {
    %c0_i32 = arith.constant 0 : i32
    %c0_i32_0 = arith.constant 0 : i32
    %c0_i32_1 = arith.constant 0 : i32
    return %c0_i32, %c0_i32_0 : i32, i32
  }
  func.func @transform_6(%arg0: i32) -> (i32, i32) {
    %c0_i32 = arith.constant 0 : i32
    %c0_i32_0 = arith.constant 0 : i32
    %c0_i32_1 = arith.constant 0 : i32
    return %c0_i32, %c0_i32_0 : i32, i32
  }
  func.func @transform_7(%arg0: i32) -> (i32, i32) {
    %c0_i32 = arith.constant 0 : i32
    %c0_i32_0 = arith.constant 0 : i32
    return %c0_i32, %arg0 : i32, i32
  }
}

module attributes {stable_mosaic.version = 11 : i64} {
  func.func @_head_kernel(%arg0: i32, %arg1: memref<8x256xf32, #tpu.memory_space<vmem>>, %arg2: memref<8x256xf32, #tpu.memory_space<vmem>>, %arg3: memref<8x8xbf16, #tpu.memory_space<vmem>>, %arg4: memref<8x8xbf16, #tpu.memory_space<vmem>>, %arg5: memref<8x1xf32, #tpu.memory_space<vmem>>, %arg6: memref<19x8xbf16, #tpu.memory_space<vmem>>, %arg7: memref<19x1xf32, #tpu.memory_space<vmem>>, %arg8: memref<19x256xf32, #tpu.memory_space<vmem>>) attributes {dimension_semantics = [#tpu.dimension_semantics<parallel>], iteration_bounds = array<i64: 2>, scalar_prefetch = 0 : i64, scratch_operands = 0 : i64, tpu.core_type = #tpu.core_type<tc>, window_params = [{transform_indices = @transform_0, window_bounds = array<i64: 8, 256>}, {transform_indices = @transform_1, window_bounds = array<i64: 8, 256>}, {pipeline_mode = #tpu.pipeline_mode<synchronous>, transform_indices = @transform_2, window_bounds = array<i64: 8, 8>}, {pipeline_mode = #tpu.pipeline_mode<synchronous>, transform_indices = @transform_3, window_bounds = array<i64: 8, 8>}, {pipeline_mode = #tpu.pipeline_mode<synchronous>, transform_indices = @transform_4, window_bounds = array<i64: 8, 1>}, {pipeline_mode = #tpu.pipeline_mode<synchronous>, transform_indices = @transform_5, window_bounds = array<i64: 19, 8>}, {pipeline_mode = #tpu.pipeline_mode<synchronous>, transform_indices = @transform_6, window_bounds = array<i64: 19, 1>}, {transform_indices = @transform_7, window_bounds = array<i64: 19, 256>}]} {
    %c0 = arith.constant 0 : index
    %c0_0 = arith.constant 0 : index
    %0 = vector.load %arg1[%c0, %c0_0] : memref<8x256xf32, #tpu.memory_space<vmem>>, vector<8x256xf32>
    %1 = arith.truncf %0 : vector<8x256xf32> to vector<8x256xbf16>
    %c0_1 = arith.constant 0 : index
    %c0_2 = arith.constant 0 : index
    %2 = vector.load %arg2[%c0_1, %c0_2] : memref<8x256xf32, #tpu.memory_space<vmem>>, vector<8x256xf32>
    %3 = arith.truncf %2 : vector<8x256xf32> to vector<8x256xbf16>
    %c0_3 = arith.constant 0 : index
    %c0_4 = arith.constant 0 : index
    %4 = vector.load %arg3[%c0_3, %c0_4] : memref<8x8xbf16, #tpu.memory_space<vmem>>, vector<8x8xbf16>
    %cst = arith.constant dense<0.000000e+00> : vector<8x256xf32>
    %5 = tpu.matmul %4, %1, %cst {dimension_numbers = #tpu.dot_dimension_numbers<[1], [0], [0], [1], [0, 0, 1, 1], [], []>} : vector<8x8xbf16>, vector<8x256xbf16>, vector<8x256xf32> -> vector<8x256xf32>
    %c0_5 = arith.constant 0 : index
    %c0_6 = arith.constant 0 : index
    %6 = vector.load %arg4[%c0_5, %c0_6] : memref<8x8xbf16, #tpu.memory_space<vmem>>, vector<8x8xbf16>
    %cst_7 = arith.constant dense<0.000000e+00> : vector<8x256xf32>
    %7 = tpu.matmul %6, %3, %cst_7 {dimension_numbers = #tpu.dot_dimension_numbers<[1], [0], [0], [1], [0, 0, 1, 1], [], []>} : vector<8x8xbf16>, vector<8x256xbf16>, vector<8x256xf32> -> vector<8x256xf32>
    %8 = arith.addf %5, %7 : vector<8x256xf32>
    %c0_8 = arith.constant 0 : index
    %c0_9 = arith.constant 0 : index
    %9 = vector.load %arg5[%c0_8, %c0_9] : memref<8x1xf32, #tpu.memory_space<vmem>>, vector<8x1xf32>
    %10 = vector.broadcast %9 : vector<8x1xf32> to vector<8x256xf32>
    %11 = arith.addf %8, %10 : vector<8x256xf32>
    %12 = arith.negf %11 : vector<8x256xf32>
    %13 = math.exp %12 : vector<8x256xf32>
    %cst_10 = arith.constant 1.000000e+00 : f32
    %14 = vector.broadcast %cst_10 : f32 to vector<8x256xf32>
    %15 = arith.addf %14, %13 : vector<8x256xf32>
    %16 = arith.divf %14, %15 : vector<8x256xf32>
    %17 = arith.mulf %11, %16 : vector<8x256xf32>
    %18 = arith.truncf %17 : vector<8x256xf32> to vector<8x256xbf16>
    %c0_11 = arith.constant 0 : index
    %c0_12 = arith.constant 0 : index
    %19 = vector.load %arg6[%c0_11, %c0_12] : memref<19x8xbf16, #tpu.memory_space<vmem>>, vector<19x8xbf16>
    %cst_13 = arith.constant dense<0.000000e+00> : vector<19x256xf32>
    %20 = tpu.matmul %19, %18, %cst_13 {dimension_numbers = #tpu.dot_dimension_numbers<[1], [0], [0], [1], [0, 0, 1, 1], [], []>} : vector<19x8xbf16>, vector<8x256xbf16>, vector<19x256xf32> -> vector<19x256xf32>
    %c0_14 = arith.constant 0 : index
    %c0_15 = arith.constant 0 : index
    %21 = vector.load %arg7[%c0_14, %c0_15] : memref<19x1xf32, #tpu.memory_space<vmem>>, vector<19x1xf32>
    %22 = vector.broadcast %21 : vector<19x1xf32> to vector<19x256xf32>
    %23 = arith.addf %20, %22 : vector<19x256xf32>
    %c0_16 = arith.constant 0 : index
    %c0_17 = arith.constant 0 : index
    %24 = vector.load %arg8[%c0_16, %c0_17] : memref<19x256xf32, #tpu.memory_space<vmem>>, vector<19x256xf32>
    tpu.vector_store %arg8[%c0_16, %c0_17], %23 {strides = array<i32>} : memref<19x256xf32, #tpu.memory_space<vmem>>, vector<19x256xf32>,
    return
  }
  func.func @transform_0(%arg0: i32) -> (i32, i32) {
    %c0_i32 = arith.constant 0 : i32
    %c0_i32_0 = arith.constant 0 : i32
    return %c0_i32, %arg0 : i32, i32
  }
  func.func @transform_1(%arg0: i32) -> (i32, i32) {
    %c0_i32 = arith.constant 0 : i32
    %c0_i32_0 = arith.constant 0 : i32
    return %c0_i32, %arg0 : i32, i32
  }
  func.func @transform_2(%arg0: i32) -> (i32, i32) {
    %c0_i32 = arith.constant 0 : i32
    %c0_i32_0 = arith.constant 0 : i32
    %c0_i32_1 = arith.constant 0 : i32
    return %c0_i32, %c0_i32_0 : i32, i32
  }
  func.func @transform_3(%arg0: i32) -> (i32, i32) {
    %c0_i32 = arith.constant 0 : i32
    %c0_i32_0 = arith.constant 0 : i32
    %c0_i32_1 = arith.constant 0 : i32
    return %c0_i32, %c0_i32_0 : i32, i32
  }
  func.func @transform_4(%arg0: i32) -> (i32, i32) {
    %c0_i32 = arith.constant 0 : i32
    %c0_i32_0 = arith.constant 0 : i32
    %c0_i32_1 = arith.constant 0 : i32
    return %c0_i32, %c0_i32_0 : i32, i32
  }
  func.func @transform_5(%arg0: i32) -> (i32, i32) {
    %c0_i32 = arith.constant 0 : i32
    %c0_i32_0 = arith.constant 0 : i32
    %c0_i32_1 = arith.constant 0 : i32
    return %c0_i32, %c0_i32_0 : i32, i32
  }
  func.func @transform_6(%arg0: i32) -> (i32, i32) {
    %c0_i32 = arith.constant 0 : i32
    %c0_i32_0 = arith.constant 0 : i32
    %c0_i32_1 = arith.constant 0 : i32
    return %c0_i32, %c0_i32_0 : i32, i32
  }
  func.func @transform_7(%arg0: i32) -> (i32, i32) {
    %c0_i32 = arith.constant 0 : i32
    %c0_i32_0 = arith.constant 0 : i32
    return %c0_i32, %arg0 : i32, i32
  }
}

</mosaic_0001>

<llo_original>
// kernel: _lambda_.4
$region0: #{_lambda_.4}
  #allocation0 [shape = 'u32[]', space=smem, size = 0x4, offset = 0x4, fixed_abs, tag = 'smem constant byte address 0x4 - core index']
  #allocation1 [shape = 'u32[144,128]{1,0:T(1,128)}', space=vmem, size = 0x12000, scoped, tag = 'internal scratch']
  %s0 = inlined_call_operand.vmem [shape: f32[36,1024], index: 0, kind: input, shape index: {}]
  %s1 = inlined_call_operand.vmem [shape: bf16[8,36], index: 1, kind: input, shape index: {}]
  %s2 = inlined_call_operand.vmem [shape: f32[8,1], index: 2, kind: input, shape index: {}]
  %s3 = inlined_call_operand.vmem [shape: f32[8,1024], index: 3, kind: output, shape index: {}]
  %s4 = sld [smem:[#allocation0]]
  $region68: #{_lambda_.4} parent=0
    _
  %s6 = ssub.s32 1, %s4
  %s7 = scalar_select 0, %s6, %s4
  $region1: #{_lambda_.4} parent=0
    #allocation2 [shape = 'u8[163840]{0}', space=vmem, size = 0x28000, scoped, tag = 'input window, operand 0']
    loop: start=0, step=1, limit=4
    $region2: #{_lambda_.4} parent=1 // loop_pre_header
      _
    $region3: #{_lambda_.4} parent=1 // loop_header
      %s9 = sphi 0, %s13
      %p10 = scmp.ge.s32.totalorder %s9, 4
      %s19 = sphi 0, %s21
      %s22 = sphi 0, %s19
      %s23 = sphi 0, %s22
      %s39 = sphi 0, %s23
      %s43 = sphi 0, %s43
      %s45 = sphi 0, %s43
      %s46 = sphi 0, %s45
      %s60 = sphi 0, %s46
      %s64 = sphi 0, %s64
      %s66 = sphi 0, %s64
      %s67 = sphi 0, %s66
      %s81 = sphi 0, %s67
      %s87 = sphi 0, %s89
      %s90 = sphi 0, %s87
      %s91 = sphi 0, %s90
      %s107 = sphi 0, %s91
    $region4: #{_lambda_.4} parent=1 // loop_header_branch
      %12 = sbr.rel (%p10) target = $region8
    $region5: #{_lambda_.4} parent=1 // loop_body
      %s14 = ssub.s32 %s9, 1
      %s15 = ssub.s32 %s9, 2
      %s16 = sadd.s32 %s9, 1
      %s17 = ssub.s32 %s9, %s16
      %p18 = scmp.eq.s32.totalorder %s17, 0
      %s20 = sadd.s32 %s19, 1
      %s21 = scalar_select %p18, %s19, %s20
      %p24 = pneg %p18
      %p25 = scmp.eq.s32.totalorder %s9, 1
      %p26 = por %p24, %p25
      %p27 = scmp.ne.s32.totalorder %s19, %s22
      %p28 = scmp.eq.s32.totalorder %s9, 0
      %p29 = por %p27, %p28
      %p30 = scmp.ne.s32.totalorder %s19, %s22
      %p31 = scmp.eq.s32.totalorder %s14, 1
      %p32 = por %p30, %p31
      %p33 = scmp.ne.s32.totalorder %s22, %s23
      %p34 = scmp.eq.s32.totalorder %s14, 0
      %p35 = por %p33, %p34
      %p36 = scmp.ne.s32.totalorder %s22, %s23
      %p37 = scmp.eq.s32.totalorder %s15, 1
      %p38 = por %p36, %p37
      %p40 = scmp.ne.s32.totalorder %s23, %s39
      %p41 = scmp.eq.s32.totalorder %s15, 0
      %p42 = por %p40, %p41
      %s44 = sadd.s32 %s43, 1
      %p47 = scmp.eq.s32.totalorder %s9, 1
      %p48 = scmp.ne.s32.totalorder %s43, %s45
      %p49 = scmp.eq.s32.totalorder %s9, 0
      %p50 = por %p48, %p49
      %p51 = scmp.ne.s32.totalorder %s43, %s45
      %p52 = scmp.eq.s32.totalorder %s14, 1
      %p53 = por %p51, %p52
      %p54 = scmp.ne.s32.totalorder %s45, %s46
      %p55 = scmp.eq.s32.totalorder %s14, 0
      %p56 = por %p54, %p55
      %p57 = scmp.ne.s32.totalorder %s45, %s46
      %p58 = scmp.eq.s32.totalorder %s15, 1
      %p59 = por %p57, %p58
      %p61 = scmp.ne.s32.totalorder %s46, %s60
      %p62 = scmp.eq.s32.totalorder %s15, 0
      %p63 = por %p61, %p62
      %s65 = sadd.s32 %s64, 1
      %p68 = scmp.eq.s32.totalorder %s9, 1
      %p69 = scmp.ne.s32.totalorder %s64, %s66
      %p70 = scmp.eq.s32.totalorder %s9, 0
      %p71 = por %p69, %p70
      %p72 = scmp.ne.s32.totalorder %s64, %s66
      %p73 = scmp.eq.s32.totalorder %s14, 1
      %p74 = por %p72, %p73
      %p75 = scmp.ne.s32.totalorder %s66, %s67
      %p76 = scmp.eq.s32.totalorder %s14, 0
      %p77 = por %p75, %p76
      %p78 = scmp.ne.s32.totalorder %s66, %s67
      %p79 = scmp.eq.s32.totalorder %s15, 1
      %p80 = por %p78, %p79
      %p82 = scmp.ne.s32.totalorder %s67, %s81
      %p83 = scmp.eq.s32.totalorder %s15, 0
      %p84 = por %p82, %p83
      %s85 = ssub.s32 %s9, %s16
      %p86 = scmp.eq.s32.totalorder %s85, 0
      %s88 = sadd.s32 %s87, 1
      %s89 = scalar_select %p86, %s87, %s88
      %p92 = pneg %p86
      %p93 = scmp.eq.s32.totalorder %s9, 1
      %p94 = por %p92, %p93
      %p95 = scmp.ne.s32.totalorder %s87, %s90
      %p96 = scmp.eq.s32.totalorder %s9, 0
      %p97 = por %p95, %p96
      %p98 = scmp.ne.s32.totalorder %s87, %s90
      %p99 = scmp.eq.s32.totalorder %s14, 1
      %p100 = por %p98, %p99
      %p101 = scmp.ne.s32.totalorder %s90, %s91
      %p102 = scmp.eq.s32.totalorder %s14, 0
      %p103 = por %p101, %p102
      %p104 = scmp.ne.s32.totalorder %s90, %s91
      %p105 = scmp.eq.s32.totalorder %s15, 1
      %p106 = por %p104, %p105
      %p108 = scmp.ne.s32.totalorder %s91, %s107
      %p109 = scmp.eq.s32.totalorder %s15, 0
      %p110 = por %p108, %p109
      %p111 = scmp.le.s32.totalorder 1, %s9
      %p112 = scmp.lt.s32.totalorder %s9, 3
      %p113 = pnand %p111, %p112
      %p114 = pneg %p113
      // Predicated region
      $region9: #{_lambda_.4} parent=5 // pred_check
        _
      $region10: #{_lambda_.4} parent=5 // pred_check_branch
        %116 = sbr.rel (%p113) target = $region12
      $region11: #{_lambda_.4} parent=5 // pred_region
        %s117 = ssub.s32 %s9, 1
        // Predicated region
        $region13: #{_lambda_.4} parent=11 // pred_check
          %p118 = pneg %p56
        $region14: #{_lambda_.4} parent=11 // pred_check_branch
          %120 = sbr.rel (%p118) target = $region16
        $region15: #{_lambda_.4} parent=11 // pred_region
          _
        $region16: #{_lambda_.4} parent=11 // pred_fallthru
          _
        // Predicated region
        $region17: #{_lambda_.4} parent=11 // pred_check
          %p121 = pneg %p77
        $region18: #{_lambda_.4} parent=11 // pred_check_branch
          %123 = sbr.rel (%p121) target = $region20
        $region19: #{_lambda_.4} parent=11 // pred_region
          _
        $region20: #{_lambda_.4} parent=11 // pred_fallthru
          _
      $region12: #{_lambda_.4} parent=5 // pred_fallthru
        _
      %p124 = scmp.lt.s32.totalorder %s9, 2
      // Predicated region
      $region21: #{_lambda_.4} parent=5 // pred_check
        %p125 = pneg %p124
      $region22: #{_lambda_.4} parent=5 // pred_check_branch
        %127 = sbr.rel (%p125) target = $region24
      $region23: #{_lambda_.4} parent=5 // pred_region
        // Predicated region
        $region25: #{_lambda_.4} parent=23 // pred_check
          %p128 = pneg %p29
        $region26: #{_lambda_.4} parent=23 // pred_check_branch
          %130 = sbr.rel (%p128) target = $region28
        $region27: #{_lambda_.4} parent=23 // pred_region
          %s131 = sand.u32 %s19, 1
          %s132 = sand.u32 %s19, 1
          %s133 = smul.addr %s132, 160
          %s134 = scalar_lea.vmem [#allocation2], %s133
          %s135 = smul.u32 4, %s9
          %s136 = smul.addr %s135, 8
          %s137 = scalar_lea.vmem %s0, %s136
          // Predicated region
          $region29: #{_lambda_.4} parent=27 // pred_check
            _
          $region30: #{_lambda_.4} parent=27 // pred_check_branch
            %139 = sbr.rel (0) target = $region32
          $region31: #{_lambda_.4} parent=27 // pred_region
            // Predicated region
            $region33: #{_lambda_.4} parent=31 // pred_check
              _
            $region34: #{_lambda_.4} parent=31 // pred_check_branch
              %141 = sbr.rel (0) target = $region36
            $region35: #{_lambda_.4} parent=31 // pred_region
              loop: start=0, step=1, limit=1
              $region37: #{_lambda_.4} parent=35 // loop_pre_header
                _
              $region38: #{_lambda_.4} parent=35 // loop_header
                %s143 = sphi 0, %s147
                %p144 = scmp.ge.s32.totalorder %s143, 1
                %s148 = sphi %s137, %s137
                %s149 = sphi %s134, %s134
              $region39: #{_lambda_.4} parent=35 // loop_header_branch
                %146 = sbr.rel (%p144) target = $region43
              $region40: #{_lambda_.4} parent=35 // loop_body
                %v150 = vld [vmem:[%s148] sm:$0xff]
                %151 = vst [vmem:[%s149] sm:$0xff] %v150
                %v152 = vld [vmem:[%s148 + $0x8] sm:$0xff]
                %153 = vst [vmem:[%s149 + $0x8] sm:$0xff] %v152
                %v154 = vld [vmem:[%s148 + $0x10] sm:$0xff]
                %155 = vst [vmem:[%s149 + $0x10] sm:$0xff] %v154
                %v156 = vld [vmem:[%s148 + $0x18] sm:$0xff]
                %157 = vst [vmem:[%s149 + $0x18] sm:$0xff] %v156
                %v158 = vld [vmem:[%s148 + $0x40] sm:$0xff]
                %159 = vst [vmem:[%s149 + $0x20] sm:$0xff] %v158
                %v160 = vld [vmem:[%s148 + $0x48] sm:$0xff]
                %161 = vst [vmem:[%s149 + $0x28] sm:$0xff] %v160
                %v162 = vld [vmem:[%s148 + $0x50] sm:$0xff]
                %163 = vst [vmem:[%s149 + $0x30] sm:$0xff] %v162
                %v164 = vld [vmem:[%s148 + $0x58] sm:$0xff]
                %165 = vst [vmem:[%s149 + $0x38] sm:$0xff] %v164
                %v166 = vld [vmem:[%s148 + $0x80] sm:$0xff]
                %167 = vst [vmem:[%s149 + $0x40] sm:$0xff] %v166
                %v168 = vld [vmem:[%s148 + $0x88] sm:$0xff]
                %169 = vst [vmem:[%s149 + $0x48] sm:$0xff] %v168
                %v170 = vld [vmem:[%s148 + $0x90] sm:$0xff]
                %171 = vst [vmem:[%s149 + $0x50] sm:$0xff] %v170
                %v172 = vld [vmem:[%s148 + $0x98] sm:$0xff]
                %173 = vst [vmem:[%s149 + $0x58] sm:$0xff] %v172
                %v174 = vld [vmem:[%s148 + $0xc0] sm:$0xff]
                %175 = vst [vmem:[%s149 + $0x60] sm:$0xff] %v174
                %v176 = vld [vmem:[%s148 + $0xc8] sm:$0xff]
                %177 = vst [vmem:[%s149 + $0x68] sm:$0xff] %v176
                %v178 = vld [vmem:[%s148 + $0xd0] sm:$0xff]
                %179 = vst [vmem:[%s149 + $0x70] sm:$0xff] %v178
                %v180 = vld [vmem:[%s148 + $0xd8] sm:$0xff]
                %181 = vst [vmem:[%s149 + $0x78] sm:$0xff] %v180
                %v182 = vld [vmem:[%s148 + $0x100] sm:$0xff]
                %183 = vst [vmem:[%s149 + $0x80] sm:$0xff] %v182
                %v184 = vld [vmem:[%s148 + $0x108] sm:$0xff]
                %185 = vst [vmem:[%s149 + $0x88] sm:$0xff] %v184
                %v186 = vld [vmem:[%s148 + $0x110] sm:$0xff]
                %187 = vst [vmem:[%s149 + $0x90] sm:$0xff] %v186
                %v188 = vld [vmem:[%s148 + $0x118] sm:$0xff]
                %189 = vst [vmem:[%s149 + $0x98] sm:$0xff] %v188
              $region41: #{_lambda_.4} parent=35 // loop_footer
                %s147 = sadd.s32 1, %s143
              $region42: #{_lambda_.4} parent=35 // loop_footer_branch
                %142 = sbr.rel target = $region38
              $region43: #{_lambda_.4} parent=35 // loop_exit
                _
            $region36: #{_lambda_.4} parent=31 // pred_fallthru
              _
            // Predicated region
            $region44: #{_lambda_.4} parent=31 // pred_check
              _
            $region45: #{_lambda_.4} parent=31 // pred_check_branch
              %191 = sbr.rel target = $region47
            $region46: #{_lambda_.4} parent=31 // pred_region
              _
            $region47: #{_lambda_.4} parent=31 // pred_fallthru
              _
          $region32: #{_lambda_.4} parent=27 // pred_fallthru
            _
          %192 = vnop
        $region28: #{_lambda_.4} parent=23 // pred_fallthru
          _
      $region24: #{_lambda_.4} parent=5 // pred_fallthru
        _
      %p193 = scmp.le.s32.totalorder 1, %s9
      %p194 = scmp.lt.s32.totalorder %s9, 3
      %p195 = pnand %p193, %p194
      %p196 = pneg %p195
      // Predicated region
      $region48: #{_lambda_.4} parent=5 // pred_check
        _
      $region49: #{_lambda_.4} parent=5 // pred_check_branch
        %198 = sbr.rel (%p195) target = $region51
      $region50: #{_lambda_.4} parent=5 // pred_region
        %s199 = ssub.s32 %s9, 1
        %s200 = sand.u32 %s22, 1
        %s201 = sand.u32 %s22, 1
        %s202 = smul.addr %s201, 160
        %s203 = scalar_lea.vmem [#allocation2], %s202
        // Predicated region
        $region52: #{_lambda_.4} parent=50 // pred_check
          %p204 = pneg %p35
        $region53: #{_lambda_.4} parent=50 // pred_check_branch
          %206 = sbr.rel (%p204) target = $region55
        $region54: #{_lambda_.4} parent=50 // pred_region
          _
        $region55: #{_lambda_.4} parent=50 // pred_fallthru
          _
        %s207 = sand.u32 %s22, 1
        %s208 = sand.u32 %s22, 1
        %s209 = smul.addr %s208, 160
        %s210 = scalar_lea.vmem [#allocation2], %s209
        %p211 = pneg %p35
        %p212 = pneg %p32
        %p213 = pneg %p56
        %p214 = pneg %p53
        %p215 = pneg %p77
        %p216 = pneg %p74
        %p217 = pneg %p103
        %p218 = pneg %p100
        %s219 = smul.u32 4, %s14
        %p220 = scmp.lt.s32.totalorder %s219, 7
        %s221 = scalar_select %p220, %s219, 7
        %s222 = smul.addr %s221, 8
        %s223 = scalar_lea.vmem %s3, %s222
        %s224 = smul.u32 4, %s14
        %s225 = smul.u32 4, %s14
        %p226 = scmp.lt.s32.totalorder %s225, 7
        %s227 = scalar_select %p226, %s225, 7
        %s228 = smul.addr %s227, 8
        %s229 = scalar_lea.vmem %s3, %s228
        %s230 = smul.u32 4, %s14
        %v232 = vld [vmem:[%s203] sm:$0xff]
        %v233 = vld [vmem:[%s203 + $0x8] sm:$0xff]
        %v234 = vld [vmem:[%s203 + $0x10] sm:$0xff]
        %v235 = vld [vmem:[%s203 + $0x18] sm:$0xff]
        %v236 = vld [vmem:[%s203 + $0x20] sm:$0xff]
        %v237 = vld [vmem:[%s203 + $0x28] sm:$0xff]
        %v238 = vld [vmem:[%s203 + $0x30] sm:$0xff]
        %v239 = vld [vmem:[%s203 + $0x38] sm:$0xff]
        %v240 = vld [vmem:[%s203 + $0x40] sm:$0xff]
        %v241 = vld [vmem:[%s203 + $0x48] sm:$0xff]
        %v242 = vld [vmem:[%s203 + $0x50] sm:$0xff]
        %v243 = vld [vmem:[%s203 + $0x58] sm:$0xff]
        %v244 = vld [vmem:[%s203 + $0x60] sm:$0xff]
        %v245 = vld [vmem:[%s203 + $0x68] sm:$0xff]
        %v246 = vld [vmem:[%s203 + $0x70] sm:$0xff]
        %v247 = vld [vmem:[%s203 + $0x78] sm:$0xff]
        %v248 = vld [vmem:[%s203 + $0x80] sm:$0xf]
        %v249 = vld [vmem:[%s203 + $0x88] sm:$0xf]
        %v250 = vld [vmem:[%s203 + $0x90] sm:$0xf]
        %v251 = vld [vmem:[%s203 + $0x98] sm:$0xf]
        %v252 = vpack.c.bf16 %v236, %v232
        %v253 = vpack.c.bf16 %v237, %v233
        %v254 = vpack.c.bf16 %v238, %v234
        %v255 = vpack.c.bf16 %v239, %v235
        %v256 = vpack.c.bf16 %v244, %v240
        %v257 = vpack.c.bf16 %v245, %v241
        %v258 = vpack.c.bf16 %v246, %v242
        %v259 = vpack.c.bf16 %v247, %v243
        %v260 = vpack.c.bf16 %v248, %v248
        %v261 = vpack.c.bf16 %v249, %v249
        %v262 = vpack.c.bf16 %v250, %v250
        %v263 = vpack.c.bf16 %v251, %v251
        %v264 = vld [vmem:[%s1] sm:$0xf]
        %v265 = vld [vmem:[%s2] sm:$0xff]
        %267 = vset.pattern.permute.xlu0 0
        %268 = vperm.xlu0 %267, %v265
        %v269 = vpop.permute.xlu0 %268
        %vm271 = vcmask 293888
        %v273 = vsel %vm271, %v264, 0
        %vm275 = vcmask 1041408
        %v277 = vsel %vm275, %v260, 0
        %v280 = vsel %vm275, %v261, 0
        %v283 = vsel %vm275, %v262, 0
        %v286 = vsel %vm275, %v263, 0
        %288 = vmatprep.subr.bf16.mxu0 %v253
        %289 = vmatpush1.bf16.msra.mxu0 %v252
        %290 = vmatprep.subr.bf16.mxu0 %v257
        %291 = vmatpush1.bf16.msra.mxu0 %v256
        %292 = vmatprep.subr.bf16.mxu0 %v280
        %293 = vmatpush1.bf16.msra.mxu0 %v277
        %294 = vmatprep.subr.bf16.mxu0 0
        %295 = vmatpush1.bf16.msra.mxu0 0
        %296 = vmatprep.subr.bf16.mxu0 0
        %297 = vmatpush1.bf16.msra.mxu0 0
        %298 = vmatprep.subr.bf16.mxu0 0
        %299 = vmatpush1.bf16.msra.mxu0 0
        %300 = vmatprep.subr.bf16.mxu0 0
        %301 = vmatpush1.bf16.msra.mxu0 0
        %302 = vmatprep.subr.bf16.mxu0 0
        %303 = vmatpush1.bf16.msra.mxu0 0
        %304 = vmatprep.subr.bf16.mxu0 0
        %305 = vmatpush1.bf16.msra.mxu0 0
        %306 = vmatprep.subr.bf16.mxu0 0
        %307 = vmatpush1.bf16.msra.mxu0 0
        %308 = vmatprep.subr.bf16.mxu0 0
        %309 = vmatpush1.bf16.msra.mxu0 0
        %310 = vmatprep.subr.bf16.mxu0 0
        %311 = vmatpush1.bf16.msra.mxu0 0
        %312 = vmatprep.subr.bf16.mxu0 0
        %313 = vmatpush1.bf16.msra.mxu0 0
        %314 = vmatprep.subr.bf16.mxu0 0
        %315 = vmatpush1.bf16.msra.mxu0 0
        %316 = vmatprep.subr.bf16.mxu0 0
        %317 = vmatpush1.bf16.msra.mxu0 0
        %318 = vmatprep.subr.bf16.mxu0 0
        %319 = vmatpush1.bf16.msra.mxu0 0
        %320 = vmatprep.mubr.bf16.mxu0 0
        %321 = vmatmul.mubr.bf16.gmra.mrb[0].mxu0 %v273
        %v322 = vpop.f32.mrb[0].mxu0
        %v323 = vadd.f32 %v269, %v322
        %v324 = vpop.f32.mrb[0].mxu0
        %v325 = vadd.f32 %v269, %v324
        %v326 = vpop.f32.mrb[0].mxu0
        %v327 = vpop.f32.mrb[0].mxu0
        %328 = vdwg.mxu0
        %329 = vmatprep.subr.bf16.mxu0 %v255
        %330 = vmatpush1.bf16.msra.mxu0 %v254
        %331 = vmatprep.subr.bf16.mxu0 %v259
        %332 = vmatpush1.bf16.msra.mxu0 %v258
        %333 = vmatprep.subr.bf16.mxu0 %v286
        %334 = vmatpush1.bf16.msra.mxu0 %v283
        %335 = vmatprep.subr.bf16.mxu0 0
        %336 = vmatpush1.bf16.msra.mxu0 0
        %337 = vmatprep.subr.bf16.mxu0 0
        %338 = vmatpush1.bf16.msra.mxu0 0
        %339 = vmatprep.subr.bf16.mxu0 0
        %340 = vmatpush1.bf16.msra.mxu0 0
        %341 = vmatprep.subr.bf16.mxu0 0
        %342 = vmatpush1.bf16.msra.mxu0 0
        %343 = vmatprep.subr.bf16.mxu0 0
        %344 = vmatpush1.bf16.msra.mxu0 0
        %345 = vmatprep.subr.bf16.mxu0 0
        %346 = vmatpush1.bf16.msra.mxu0 0
        %347 = vmatprep.subr.bf16.mxu0 0
        %348 = vmatpush1.bf16.msra.mxu0 0
        %349 = vmatprep.subr.bf16.mxu0 0
        %350 = vmatpush1.bf16.msra.mxu0 0
        %351 = vmatprep.subr.bf16.mxu0 0
        %352 = vmatpush1.bf16.msra.mxu0 0
        %353 = vmatprep.subr.bf16.mxu0 0
        %354 = vmatpush1.bf16.msra.mxu0 0
        %355 = vmatprep.subr.bf16.mxu0 0
        %356 = vmatpush1.bf16.msra.mxu0 0
        %357 = vmatprep.subr.bf16.mxu0 0
        %358 = vmatpush1.bf16.msra.mxu0 0
        %359 = vmatprep.subr.bf16.mxu0 0
        %360 = vmatpush1.bf16.msra.mxu0 0
        %361 = vmatprep.mubr.bf16.mxu0 0
        %362 = vmatmul.mubr.bf16.gmra.mrb[0].mxu0 %v273
        %v363 = vpop.f32.mrb[0].mxu0
        %v364 = vadd.f32 %v269, %v363
        %v365 = vpop.f32.mrb[0].mxu0
        %v366 = vadd.f32 %v269, %v365
        %v367 = vpop.f32.mrb[0].mxu0
        %v368 = vpop.f32.mrb[0].mxu0
        %369 = vdwg.mxu0
        %v370 = vxor.u32 %v323, 2147483648
        %v371 = vxor.u32 %v325, 2147483648
        %v372 = vxor.u32 %v364, 2147483648
        %v373 = vxor.u32 %v366, 2147483648
        %v374 = vmul.f32 %v370, 1.442695
        %v375 = vpow.pop %v374
        %v376 = vmul.f32 %v371, 1.442695
        %v377 = vpow.pop %v376
        %v378 = vmul.f32 %v372, 1.442695
        %v379 = vpow.pop %v378
        %v380 = vmul.f32 %v373, 1.442695
        %v381 = vpow.pop %v380
        %v382 = vadd.f32 %v375, 1.0
        %v383 = vadd.f32 %v377, 1.0
        %v384 = vadd.f32 %v379, 1.0
        %v385 = vadd.f32 %v381, 1.0
        %v386 = vrcp.pop %v382
        %v387 = vmul.f32 1.0, %v386
        %v388 = vrcp.pop %v383
        %v389 = vmul.f32 1.0, %v388
        %v390 = vrcp.pop %v384
        %v391 = vmul.f32 1.0, %v390
        %v392 = vrcp.pop %v385
        %v393 = vmul.f32 1.0, %v392
        %v394 = vmul.f32 %v323, %v387
        %v395 = vmul.f32 %v325, %v389
        %v396 = vmul.f32 %v364, %v391
        %v397 = vmul.f32 %v366, %v393
        %398 = vst [vmem:[%s229] sm:$0xff] %v394
        %399 = vst [vmem:[%s229 + $0x8] sm:$0xff] %v395
        %400 = vst [vmem:[%s229 + $0x10] sm:$0xff] %v396
        %401 = vst [vmem:[%s229 + $0x18] sm:$0xff] %v397
        %s402 = smul.u32 4, %s14
        %p403 = scmp.lt.s32.totalorder %s402, 7
        %s404 = scalar_select %p403, %s402, 7
        %s405 = smul.addr %s404, 8
        %s406 = scalar_lea.vmem %s3, %s405
        // Predicated region
        $region56: #{_lambda_.4} parent=50 // pred_check
          %p407 = pneg %p100
        $region57: #{_lambda_.4} parent=50 // pred_check_branch
          %409 = sbr.rel (%p407) target = $region59
        $region58: #{_lambda_.4} parent=50 // pred_region
          %s410 = smul.u32 4, %s14
        $region59: #{_lambda_.4} parent=50 // pred_fallthru
          _
      $region51: #{_lambda_.4} parent=5 // pred_fallthru
        _
      %p411 = scmp.le.s32.totalorder 2, %s9
      // Predicated region
      $region60: #{_lambda_.4} parent=5 // pred_check
        %p412 = pneg %p411
      $region61: #{_lambda_.4} parent=5 // pred_check_branch
        %414 = sbr.rel (%p412) target = $region63
      $region62: #{_lambda_.4} parent=5 // pred_region
        %s415 = ssub.s32 %s9, 2
        // Predicated region
        $region64: #{_lambda_.4} parent=62 // pred_check
          %p416 = pneg %p106
        $region65: #{_lambda_.4} parent=62 // pred_check_branch
          %418 = sbr.rel (%p416) target = $region67
        $region66: #{_lambda_.4} parent=62 // pred_region
          %s419 = smul.u32 4, %s15
          %p420 = scmp.lt.s32.totalorder %s419, 7
          %s421 = scalar_select %p420, %s419, 7
          %s422 = smul.addr %s421, 8
          %s423 = scalar_lea.vmem %s3, %s422
        $region67: #{_lambda_.4} parent=62 // pred_fallthru
          _
      $region63: #{_lambda_.4} parent=5 // pred_fallthru
        _
    $region6: #{_lambda_.4} parent=1 // loop_footer
      %s13 = sadd.s32 1, %s9
    $region7: #{_lambda_.4} parent=1 // loop_footer_branch
      %8 = sbr.rel target = $region3
    $region8: #{_lambda_.4} parent=1 // loop_exit
      _

// kernel: _lambda_.5
$region0: #{_lambda_.5}
  #allocation0 [shape = 'u32[]', space=smem, size = 0x4, offset = 0x4, fixed_abs, tag = 'smem constant byte address 0x4 - core index']
  #allocation1 [shape = 'u32[144,128]{1,0:T(1,128)}', space=vmem, size = 0x12000, scoped, tag = 'internal scratch']
  %s0 = inlined_call_operand.vmem [shape: f32[72,256], index: 0, kind: input, shape index: {}]
  %s1 = inlined_call_operand.vmem [shape: bf16[16,72], index: 1, kind: input, shape index: {}]
  %s2 = inlined_call_operand.vmem [shape: f32[16,1], index: 2, kind: input, shape index: {}]
  %s3 = inlined_call_operand.vmem [shape: f32[16,256], index: 3, kind: output, shape index: {}]
  %s4 = sld [smem:[#allocation0]]
  $region117: #{_lambda_.5} parent=0
    _
  %s6 = ssub.s32 1, %s4
  %s7 = scalar_select 0, %s6, %s4
  $region1: #{_lambda_.5} parent=0
    #allocation2 [shape = 'u8[73728]{0}', space=vmem, size = 0x12000, scoped, tag = 'input window, operand 0']
    #allocation3 [shape = 'u8[16384]{0}', space=vmem, size = 0x4000, scoped, tag = 'output window, operand 0']
    loop: start=0, step=1, limit=4
    $region2: #{_lambda_.5} parent=1 // loop_pre_header
      _
    $region3: #{_lambda_.5} parent=1 // loop_header
      %s9 = sphi 0, %s13
      %p10 = scmp.ge.s32.totalorder %s9, 4
      %s19 = sphi 0, %s21
      %s22 = sphi 0, %s19
      %s23 = sphi 0, %s22
      %s39 = sphi 0, %s23
      %s43 = sphi 0, %s43
      %s45 = sphi 0, %s43
      %s46 = sphi 0, %s45
      %s60 = sphi 0, %s46
      %s64 = sphi 0, %s64
      %s66 = sphi 0, %s64
      %s67 = sphi 0, %s66
      %s81 = sphi 0, %s67
      %s87 = sphi 0, %s89
      %s90 = sphi 0, %s87
      %s91 = sphi 0, %s90
      %s107 = sphi 0, %s91
    $region4: #{_lambda_.5} parent=1 // loop_header_branch
      %12 = sbr.rel (%p10) target = $region8
    $region5: #{_lambda_.5} parent=1 // loop_body
      %s14 = ssub.s32 %s9, 1
      %s15 = ssub.s32 %s9, 2
      %s16 = sadd.s32 %s9, 1
      %s17 = ssub.s32 %s9, %s16
      %p18 = scmp.eq.s32.totalorder %s17, 0
      %s20 = sadd.s32 %s19, 1
      %s21 = scalar_select %p18, %s19, %s20
      %p24 = pneg %p18
      %p25 = scmp.eq.s32.totalorder %s9, 1
      %p26 = por %p24, %p25
      %p27 = scmp.ne.s32.totalorder %s19, %s22
      %p28 = scmp.eq.s32.totalorder %s9, 0
      %p29 = por %p27, %p28
      %p30 = scmp.ne.s32.totalorder %s19, %s22
      %p31 = scmp.eq.s32.totalorder %s14, 1
      %p32 = por %p30, %p31
      %p33 = scmp.ne.s32.totalorder %s22, %s23
      %p34 = scmp.eq.s32.totalorder %s14, 0
      %p35 = por %p33, %p34
      %p36 = scmp.ne.s32.totalorder %s22, %s23
      %p37 = scmp.eq.s32.totalorder %s15, 1
      %p38 = por %p36, %p37
      %p40 = scmp.ne.s32.totalorder %s23, %s39
      %p41 = scmp.eq.s32.totalorder %s15, 0
      %p42 = por %p40, %p41
      %s44 = sadd.s32 %s43, 1
      %p47 = scmp.eq.s32.totalorder %s9, 1
      %p48 = scmp.ne.s32.totalorder %s43, %s45
      %p49 = scmp.eq.s32.totalorder %s9, 0
      %p50 = por %p48, %p49
      %p51 = scmp.ne.s32.totalorder %s43, %s45
      %p52 = scmp.eq.s32.totalorder %s14, 1
      %p53 = por %p51, %p52
      %p54 = scmp.ne.s32.totalorder %s45, %s46
      %p55 = scmp.eq.s32.totalorder %s14, 0
      %p56 = por %p54, %p55
      %p57 = scmp.ne.s32.totalorder %s45, %s46
      %p58 = scmp.eq.s32.totalorder %s15, 1
      %p59 = por %p57, %p58
      %p61 = scmp.ne.s32.totalorder %s46, %s60
      %p62 = scmp.eq.s32.totalorder %s15, 0
      %p63 = por %p61, %p62
      %s65 = sadd.s32 %s64, 1
      %p68 = scmp.eq.s32.totalorder %s9, 1
      %p69 = scmp.ne.s32.totalorder %s64, %s66
      %p70 = scmp.eq.s32.totalorder %s9, 0
      %p71 = por %p69, %p70
      %p72 = scmp.ne.s32.totalorder %s64, %s66
      %p73 = scmp.eq.s32.totalorder %s14, 1
      %p74 = por %p72, %p73
      %p75 = scmp.ne.s32.totalorder %s66, %s67
      %p76 = scmp.eq.s32.totalorder %s14, 0
      %p77 = por %p75, %p76
      %p78 = scmp.ne.s32.totalorder %s66, %s67
      %p79 = scmp.eq.s32.totalorder %s15, 1
      %p80 = por %p78, %p79
      %p82 = scmp.ne.s32.totalorder %s67, %s81
      %p83 = scmp.eq.s32.totalorder %s15, 0
      %p84 = por %p82, %p83
      %s85 = ssub.s32 %s9, %s16
      %p86 = scmp.eq.s32.totalorder %s85, 0
      %s88 = sadd.s32 %s87, 1
      %s89 = scalar_select %p86, %s87, %s88
      %p92 = pneg %p86
      %p93 = scmp.eq.s32.totalorder %s9, 1
      %p94 = por %p92, %p93
      %p95 = scmp.ne.s32.totalorder %s87, %s90
      %p96 = scmp.eq.s32.totalorder %s9, 0
      %p97 = por %p95, %p96
      %p98 = scmp.ne.s32.totalorder %s87, %s90
      %p99 = scmp.eq.s32.totalorder %s14, 1
      %p100 = por %p98, %p99
      %p101 = scmp.ne.s32.totalorder %s90, %s91
      %p102 = scmp.eq.s32.totalorder %s14, 0
      %p103 = por %p101, %p102
      %p104 = scmp.ne.s32.totalorder %s90, %s91
      %p105 = scmp.eq.s32.totalorder %s15, 1
      %p106 = por %p104, %p105
      %p108 = scmp.ne.s32.totalorder %s91, %s107
      %p109 = scmp.eq.s32.totalorder %s15, 0
      %p110 = por %p108, %p109
      %p111 = scmp.le.s32.totalorder 1, %s9
      %p112 = scmp.lt.s32.totalorder %s9, 3
      %p113 = pnand %p111, %p112
      %p114 = pneg %p113
      // Predicated region
      $region9: #{_lambda_.5} parent=5 // pred_check
        _
      $region10: #{_lambda_.5} parent=5 // pred_check_branch
        %116 = sbr.rel (%p113) target = $region12
      $region11: #{_lambda_.5} parent=5 // pred_region
        %s117 = ssub.s32 %s9, 1
        // Predicated region
        $region13: #{_lambda_.5} parent=11 // pred_check
          %p118 = pneg %p56
        $region14: #{_lambda_.5} parent=11 // pred_check_branch
          %120 = sbr.rel (%p118) target = $region16
        $region15: #{_lambda_.5} parent=11 // pred_region
          _
        $region16: #{_lambda_.5} parent=11 // pred_fallthru
          _
        // Predicated region
        $region17: #{_lambda_.5} parent=11 // pred_check
          %p121 = pneg %p77
        $region18: #{_lambda_.5} parent=11 // pred_check_branch
          %123 = sbr.rel (%p121) target = $region20
        $region19: #{_lambda_.5} parent=11 // pred_region
          _
        $region20: #{_lambda_.5} parent=11 // pred_fallthru
          _
      $region12: #{_lambda_.5} parent=5 // pred_fallthru
        _
      %p124 = scmp.lt.s32.totalorder %s9, 2
      // Predicated region
      $region21: #{_lambda_.5} parent=5 // pred_check
        %p125 = pneg %p124
      $region22: #{_lambda_.5} parent=5 // pred_check_branch
        %127 = sbr.rel (%p125) target = $region24
      $region23: #{_lambda_.5} parent=5 // pred_region
        // Predicated region
        $region25: #{_lambda_.5} parent=23 // pred_check
          %p128 = pneg %p29
        $region26: #{_lambda_.5} parent=23 // pred_check_branch
          %130 = sbr.rel (%p128) target = $region28
        $region27: #{_lambda_.5} parent=23 // pred_region
          %s131 = sand.u32 %s19, 1
          %s132 = sand.u32 %s19, 1
          %s133 = smul.addr %s132, 72
          %s134 = scalar_lea.vmem [#allocation2], %s133
          %s135 = smul.addr %s9, 8
          %s136 = scalar_lea.vmem %s0, %s135
          // Predicated region
          $region29: #{_lambda_.5} parent=27 // pred_check
            _
          $region30: #{_lambda_.5} parent=27 // pred_check_branch
            %138 = sbr.rel (0) target = $region32
          $region31: #{_lambda_.5} parent=27 // pred_region
            // Predicated region
            $region33: #{_lambda_.5} parent=31 // pred_check
              _
            $region34: #{_lambda_.5} parent=31 // pred_check_branch
              %140 = sbr.rel (0) target = $region36
            $region35: #{_lambda_.5} parent=31 // pred_region
              // Predicated region
              $region48: #{_lambda_.5} parent=35 // pred_check
                _
              $region49: #{_lambda_.5} parent=35 // pred_check_branch
                %171 = sbr.rel (0) target = $region51
              $region50: #{_lambda_.5} parent=35 // pred_region
                loop: start=0, step=1, limit=1
                $region52: #{_lambda_.5} parent=50 // loop_pre_header
                  _
                $region53: #{_lambda_.5} parent=50 // loop_header
                  %s173 = sphi 0, %s177
                  %p174 = scmp.ge.s32.totalorder %s173, 1
                  %s178 = sphi %s136, %s136
                  %s179 = sphi %s134, %s134
                $region54: #{_lambda_.5} parent=50 // loop_header_branch
                  %176 = sbr.rel (%p174) target = $region58
                $region55: #{_lambda_.5} parent=50 // loop_body
                  %v180 = vld [vmem:[%s178] sm:$0xff]
                  %181 = vst [vmem:[%s179] sm:$0xff] %v180
                  %v182 = vld [vmem:[%s178 + $0x10] sm:$0xff]
                  %183 = vst [vmem:[%s179 + $0x8] sm:$0xff] %v182
                  %v184 = vld [vmem:[%s178 + $0x20] sm:$0xff]
                  %185 = vst [vmem:[%s179 + $0x10] sm:$0xff] %v184
                  %v186 = vld [vmem:[%s178 + $0x30] sm:$0xff]
                  %187 = vst [vmem:[%s179 + $0x18] sm:$0xff] %v186
                  %v188 = vld [vmem:[%s178 + $0x40] sm:$0xff]
                  %189 = vst [vmem:[%s179 + $0x20] sm:$0xff] %v188
                  %v190 = vld [vmem:[%s178 + $0x50] sm:$0xff]
                  %191 = vst [vmem:[%s179 + $0x28] sm:$0xff] %v190
                  %v192 = vld [vmem:[%s178 + $0x60] sm:$0xff]
                  %193 = vst [vmem:[%s179 + $0x30] sm:$0xff] %v192
                  %v194 = vld [vmem:[%s178 + $0x70] sm:$0xff]
                  %195 = vst [vmem:[%s179 + $0x38] sm:$0xff] %v194
                  %v196 = vld [vmem:[%s178 + $0x80] sm:$0xff]
                  %197 = vst [vmem:[%s179 + $0x40] sm:$0xff] %v196
                $region56: #{_lambda_.5} parent=50 // loop_footer
                  %s177 = sadd.s32 1, %s173
                $region57: #{_lambda_.5} parent=50 // loop_footer_branch
                  %172 = sbr.rel target = $region53
                $region58: #{_lambda_.5} parent=50 // loop_exit
                  _
              $region51: #{_lambda_.5} parent=35 // pred_fallthru
                _
              // Predicated region
              $region59: #{_lambda_.5} parent=35 // pred_check
                _
              $region60: #{_lambda_.5} parent=35 // pred_check_branch
                %199 = sbr.rel target = $region62
              $region61: #{_lambda_.5} parent=35 // pred_region
                _
              $region62: #{_lambda_.5} parent=35 // pred_fallthru
                _
            $region36: #{_lambda_.5} parent=31 // pred_fallthru
              _
            // Predicated region
            $region37: #{_lambda_.5} parent=31 // pred_check
              _
            $region38: #{_lambda_.5} parent=31 // pred_check_branch
              %142 = sbr.rel target = $region40
            $region39: #{_lambda_.5} parent=31 // pred_region
              loop: start=0, step=1, limit=1
              $region41: #{_lambda_.5} parent=39 // loop_pre_header
                _
              $region42: #{_lambda_.5} parent=39 // loop_header
                %s145 = sphi 0, %s149
                %p146 = scmp.ge.s32.totalorder %s145, 1
                %s150 = sphi %s136, %s136
                %s151 = sphi %s134, %s134
              $region43: #{_lambda_.5} parent=39 // loop_header_branch
                %148 = sbr.rel (%p146) target = $region47
              $region44: #{_lambda_.5} parent=39 // loop_body
                %v152 = vld [vmem:[%s150] sm:$0xff]
                %153 = vst [vmem:[%s151] sm:$0xff] %v152
                %v154 = vld [vmem:[%s150 + $0x10] sm:$0xff]
                %155 = vst [vmem:[%s151 + $0x8] sm:$0xff] %v154
                %v156 = vld [vmem:[%s150 + $0x20] sm:$0xff]
                %157 = vst [vmem:[%s151 + $0x10] sm:$0xff] %v156
                %v158 = vld [vmem:[%s150 + $0x30] sm:$0xff]
                %159 = vst [vmem:[%s151 + $0x18] sm:$0xff] %v158
                %v160 = vld [vmem:[%s150 + $0x40] sm:$0xff]
                %161 = vst [vmem:[%s151 + $0x20] sm:$0xff] %v160
                %v162 = vld [vmem:[%s150 + $0x50] sm:$0xff]
                %163 = vst [vmem:[%s151 + $0x28] sm:$0xff] %v162
                %v164 = vld [vmem:[%s150 + $0x60] sm:$0xff]
                %165 = vst [vmem:[%s151 + $0x30] sm:$0xff] %v164
                %v166 = vld [vmem:[%s150 + $0x70] sm:$0xff]
                %167 = vst [vmem:[%s151 + $0x38] sm:$0xff] %v166
                %v168 = vld [vmem:[%s150 + $0x80] sm:$0xff]
                %169 = vst [vmem:[%s151 + $0x40] sm:$0xff] %v168
              $region45: #{_lambda_.5} parent=39 // loop_footer
                %s149 = sadd.s32 1, %s145
              $region46: #{_lambda_.5} parent=39 // loop_footer_branch
                %144 = sbr.rel target = $region42
              $region47: #{_lambda_.5} parent=39 // loop_exit
                _
            $region40: #{_lambda_.5} parent=31 // pred_fallthru
              _
          $region32: #{_lambda_.5} parent=27 // pred_fallthru
            _
          %200 = vnop
        $region28: #{_lambda_.5} parent=23 // pred_fallthru
          _
      $region24: #{_lambda_.5} parent=5 // pred_fallthru
        _
      %p201 = scmp.le.s32.totalorder 1, %s9
      %p202 = scmp.lt.s32.totalorder %s9, 3
      %p203 = pnand %p201, %p202
      %p204 = pneg %p203
      // Predicated region
      $region63: #{_lambda_.5} parent=5 // pred_check
        _
      $region64: #{_lambda_.5} parent=5 // pred_check_branch
        %206 = sbr.rel (%p203) target = $region66
      $region65: #{_lambda_.5} parent=5 // pred_region
        %s207 = ssub.s32 %s9, 1
        %s208 = sand.u32 %s22, 1
        %s209 = sand.u32 %s22, 1
        %s210 = smul.addr %s209, 72
        %s211 = scalar_lea.vmem [#allocation2], %s210
        // Predicated region
        $region67: #{_lambda_.5} parent=65 // pred_check
          %p212 = pneg %p35
        $region68: #{_lambda_.5} parent=65 // pred_check_branch
          %214 = sbr.rel (%p212) target = $region70
        $region69: #{_lambda_.5} parent=65 // pred_region
          _
        $region70: #{_lambda_.5} parent=65 // pred_fallthru
          _
        %s215 = sand.u32 %s22, 1
        %s216 = sand.u32 %s22, 1
        %s217 = smul.addr %s216, 72
        %s218 = scalar_lea.vmem [#allocation2], %s217
        %p219 = pneg %p35
        %p220 = pneg %p32
        %p221 = pneg %p56
        %p222 = pneg %p53
        %p223 = pneg %p77
        %p224 = pneg %p74
        %p225 = pneg %p103
        %p226 = pneg %p100
        %s227 = sand.u32 %s90, 1
        %s228 = sand.u32 %s90, 1
        %s229 = smul.addr %s228, 16
        %s230 = scalar_lea.vmem [#allocation3], %s229
        %v232 = vld [vmem:[%s211] sm:$0xff]
        %v233 = vld [vmem:[%s211 + $0x8] sm:$0xff]
        %v234 = vld [vmem:[%s211 + $0x10] sm:$0xff]
        %v235 = vld [vmem:[%s211 + $0x18] sm:$0xff]
        %v236 = vld [vmem:[%s211 + $0x20] sm:$0xff]
        %v237 = vld [vmem:[%s211 + $0x28] sm:$0xff]
        %v238 = vld [vmem:[%s211 + $0x30] sm:$0xff]
        %v239 = vld [vmem:[%s211 + $0x38] sm:$0xff]
        %v240 = vld [vmem:[%s211 + $0x40] sm:$0xff]
        %v241 = vpack.c.bf16 %v233, %v232
        %v242 = vpack.c.bf16 %v235, %v234
        %v243 = vpack.c.bf16 %v237, %v236
        %v244 = vpack.c.bf16 %v239, %v238
        %v245 = vpack.c.bf16 %v240, %v240
        %v246 = vld [vmem:[%s1] sm:$0xf]
        %v247 = vld [vmem:[%s1 + $0x4] sm:$0xf]
        %v248 = vld [vmem:[%s2] sm:$0xff]
        %v249 = vld [vmem:[%s2 + $0x8] sm:$0xff]
        %251 = vset.pattern.permute.xlu0 0
        %252 = vperm.xlu0 %251, %v248
        %v253 = vpop.permute.xlu0 %252
        %256 = vset.pattern.permute.xlu0 0
        %257 = vperm.xlu0 %256, %v249
        %v258 = vpop.permute.xlu0 %257
        %v262 = vunpack.c.l.b16 %v246
        %v263 = vunpack.c.l.b16 %v247
        %v264 = vpack.c.b16 %v263, %v262
        %vm265 = vcmask 588800
        %v267 = vsel %vm265, %v264, 0
        %vm269 = vcmask 1043456
        %v271 = vsel %vm269, %v245, 0
        %273 = vmatprep.subr.bf16.mxu0 0
        %274 = vmatpush1.bf16.msra.mxu0 %v241
        %275 = vmatprep.subr.bf16.mxu0 0
        %276 = vmatpush1.bf16.msra.mxu0 %v242
        %277 = vmatprep.subr.bf16.mxu0 0
        %278 = vmatpush1.bf16.msra.mxu0 %v243
        %279 = vmatprep.subr.bf16.mxu0 0
        %280 = vmatpush1.bf16.msra.mxu0 %v244
        %281 = vmatprep.subr.bf16.mxu0 0
        %282 = vmatpush1.bf16.msra.mxu0 %v271
        %283 = vmatprep.subr.bf16.mxu0 0
        %284 = vmatpush1.bf16.msra.mxu0 0
        %285 = vmatprep.subr.bf16.mxu0 0
        %286 = vmatpush1.bf16.msra.mxu0 0
        %287 = vmatprep.subr.bf16.mxu0 0
        %288 = vmatpush1.bf16.msra.mxu0 0
        %289 = vmatprep.subr.bf16.mxu0 0
        %290 = vmatpush1.bf16.msra.mxu0 0
        %291 = vmatprep.subr.bf16.mxu0 0
        %292 = vmatpush1.bf16.msra.mxu0 0
        %293 = vmatprep.subr.bf16.mxu0 0
        %294 = vmatpush1.bf16.msra.mxu0 0
        %295 = vmatprep.subr.bf16.mxu0 0
        %296 = vmatpush1.bf16.msra.mxu0 0
        %297 = vmatprep.subr.bf16.mxu0 0
        %298 = vmatpush1.bf16.msra.mxu0 0
        %299 = vmatprep.subr.bf16.mxu0 0
        %300 = vmatpush1.bf16.msra.mxu0 0
        %301 = vmatprep.subr.bf16.mxu0 0
        %302 = vmatpush1.bf16.msra.mxu0 0
        %303 = vmatprep.subr.bf16.mxu0 0
        %304 = vmatpush1.bf16.msra.mxu0 0
        %305 = vmatprep.mubr.bf16.mxu0 0
        %306 = vmatmul.mubr.bf16.gmra.mrb[0].mxu0 %v267
        %v307 = vpop.f32.mrb[0].mxu0
        %v308 = vadd.f32 %v253, %v307
        %v309 = vpop.f32.mrb[0].mxu0
        %v310 = vpop.f32.mrb[0].mxu0
        %v311 = vadd.f32 %v258, %v310
        %v312 = vpop.f32.mrb[0].mxu0
        %313 = vdwg.mxu0
        %v314 = vxor.u32 %v308, 2147483648
        %v315 = vxor.u32 %v311, 2147483648
        %v316 = vmul.f32 %v314, 1.442695
        %v317 = vpow.pop %v316
        %v318 = vmul.f32 %v315, 1.442695
        %v319 = vpow.pop %v318
        %v320 = vadd.f32 %v317, 1.0
        %v321 = vadd.f32 %v319, 1.0
        %v322 = vrcp.pop %v320
        %v323 = vmul.f32 1.0, %v322
        %v324 = vrcp.pop %v321
        %v325 = vmul.f32 1.0, %v324
        %v326 = vmul.f32 %v308, %v323
        %v327 = vmul.f32 %v311, %v325
        %328 = vst [vmem:[%s230] sm:$0xff] %v326
        %329 = vst [vmem:[%s230 + $0x8] sm:$0xff] %v327
        %s330 = sand.u32 %s90, 1
        %s331 = sand.u32 %s90, 1
        %s332 = smul.addr %s331, 16
        %s333 = scalar_lea.vmem [#allocation3], %s332
        // Predicated region
        $region71: #{_lambda_.5} parent=65 // pred_check
          %p334 = pneg %p100
        $region72: #{_lambda_.5} parent=65 // pred_check_branch
          %336 = sbr.rel (%p334) target = $region74
        $region73: #{_lambda_.5} parent=65 // pred_region
          %s337 = smul.addr %s14, 8
          %s338 = scalar_lea.vmem %s3, %s337
          // Predicated region
          $region75: #{_lambda_.5} parent=73 // pred_check
            _
          $region76: #{_lambda_.5} parent=73 // pred_check_branch
            %340 = sbr.rel (0) target = $region78
          $region77: #{_lambda_.5} parent=73 // pred_region
            // Predicated region
            $region79: #{_lambda_.5} parent=77 // pred_check
              _
            $region80: #{_lambda_.5} parent=77 // pred_check_branch
              %342 = sbr.rel (0) target = $region82
            $region81: #{_lambda_.5} parent=77 // pred_region
              // Predicated region
              $region94: #{_lambda_.5} parent=81 // pred_check
                _
              $region95: #{_lambda_.5} parent=81 // pred_check_branch
                %359 = sbr.rel (0) target = $region97
              $region96: #{_lambda_.5} parent=81 // pred_region
                loop: start=0, step=1, limit=1
                $region98: #{_lambda_.5} parent=96 // loop_pre_header
                  _
                $region99: #{_lambda_.5} parent=96 // loop_header
                  %s361 = sphi 0, %s365
                  %p362 = scmp.ge.s32.totalorder %s361, 1
                  %s366 = sphi %s333, %s333
                  %s367 = sphi %s338, %s338
                $region100: #{_lambda_.5} parent=96 // loop_header_branch
                  %364 = sbr.rel (%p362) target = $region104
                $region101: #{_lambda_.5} parent=96 // loop_body
                  %v368 = vld [vmem:[%s366] sm:$0xff]
                  %369 = vst [vmem:[%s367] sm:$0xff] %v368
                  %v370 = vld [vmem:[%s366 + $0x8] sm:$0xff]
                  %371 = vst [vmem:[%s367 + $0x10] sm:$0xff] %v370
                $region102: #{_lambda_.5} parent=96 // loop_footer
                  %s365 = sadd.s32 1, %s361
                $region103: #{_lambda_.5} parent=96 // loop_footer_branch
                  %360 = sbr.rel target = $region99
                $region104: #{_lambda_.5} parent=96 // loop_exit
                  _
              $region97: #{_lambda_.5} parent=81 // pred_fallthru
                _
              // Predicated region
              $region105: #{_lambda_.5} parent=81 // pred_check
                _
              $region106: #{_lambda_.5} parent=81 // pred_check_branch
                %373 = sbr.rel target = $region108
              $region107: #{_lambda_.5} parent=81 // pred_region
                _
              $region108: #{_lambda_.5} parent=81 // pred_fallthru
                _
            $region82: #{_lambda_.5} parent=77 // pred_fallthru
              _
            // Predicated region
            $region83: #{_lambda_.5} parent=77 // pred_check
              _
            $region84: #{_lambda_.5} parent=77 // pred_check_branch
              %344 = sbr.rel target = $region86
            $region85: #{_lambda_.5} parent=77 // pred_region
              loop: start=0, step=1, limit=1
              $region87: #{_lambda_.5} parent=85 // loop_pre_header
                _
              $region88: #{_lambda_.5} parent=85 // loop_header
                %s347 = sphi 0, %s351
                %p348 = scmp.ge.s32.totalorder %s347, 1
                %s352 = sphi %s333, %s333
                %s353 = sphi %s338, %s338
              $region89: #{_lambda_.5} parent=85 // loop_header_branch
                %350 = sbr.rel (%p348) target = $region93
              $region90: #{_lambda_.5} parent=85 // loop_body
                %v354 = vld [vmem:[%s352] sm:$0xff]
                %355 = vst [vmem:[%s353] sm:$0xff] %v354
                %v356 = vld [vmem:[%s352 + $0x8] sm:$0xff]
                %357 = vst [vmem:[%s353 + $0x10] sm:$0xff] %v356
              $region91: #{_lambda_.5} parent=85 // loop_footer
                %s351 = sadd.s32 1, %s347
              $region92: #{_lambda_.5} parent=85 // loop_footer_branch
                %346 = sbr.rel target = $region88
              $region93: #{_lambda_.5} parent=85 // loop_exit
                _
            $region86: #{_lambda_.5} parent=77 // pred_fallthru
              _
          $region78: #{_lambda_.5} parent=73 // pred_fallthru
            _
          %374 = vnop
        $region74: #{_lambda_.5} parent=65 // pred_fallthru
          _
      $region66: #{_lambda_.5} parent=5 // pred_fallthru
        _
      %p375 = scmp.le.s32.totalorder 2, %s9
      // Predicated region
      $region109: #{_lambda_.5} parent=5 // pred_check
        %p376 = pneg %p375
      $region110: #{_lambda_.5} parent=5 // pred_check_branch
        %378 = sbr.rel (%p376) target = $region112
      $region111: #{_lambda_.5} parent=5 // pred_region
        %s379 = ssub.s32 %s9, 2
        // Predicated region
        $region113: #{_lambda_.5} parent=111 // pred_check
          %p380 = pneg %p106
        $region114: #{_lambda_.5} parent=111 // pred_check_branch
          %382 = sbr.rel (%p380) target = $region116
        $region115: #{_lambda_.5} parent=111 // pred_region
          %s383 = sand.u32 %s91, 1
          %s384 = sand.u32 %s91, 1
          %s385 = smul.addr %s384, 16
          %s386 = scalar_lea.vmem [#allocation3], %s385
        $region116: #{_lambda_.5} parent=111 // pred_fallthru
          _
      $region112: #{_lambda_.5} parent=5 // pred_fallthru
        _
    $region6: #{_lambda_.5} parent=1 // loop_footer
      %s13 = sadd.s32 1, %s9
    $region7: #{_lambda_.5} parent=1 // loop_footer_branch
      %8 = sbr.rel target = $region3
    $region8: #{_lambda_.5} parent=1 // loop_exit
      _

// kernel: _lambda_.7
$region0: #{_lambda_.7}
  #allocation0 [shape = 'u32[]', space=smem, size = 0x4, offset = 0x4, fixed_abs, tag = 'smem constant byte address 0x4 - core index']
  #allocation1 [shape = 'u32[144,128]{1,0:T(1,128)}', space=vmem, size = 0x12000, scoped, tag = 'internal scratch']
  %s0 = inlined_call_operand.vmem [shape: f32[16,128], index: 0, kind: input, shape index: {}]
  %s1 = inlined_call_operand.vmem [shape: f32[16,128], index: 1, kind: input, shape index: {}]
  %s2 = inlined_call_operand.vmem [shape: bf16[16,16], index: 2, kind: input, shape index: {}]
  %s3 = inlined_call_operand.vmem [shape: bf16[16,16], index: 3, kind: input, shape index: {}]
  %s4 = inlined_call_operand.vmem [shape: f32[16,1], index: 4, kind: input, shape index: {}]
  %s5 = inlined_call_operand.vmem [shape: bf16[19,16], index: 5, kind: input, shape index: {}]
  %s6 = inlined_call_operand.vmem [shape: f32[19,1], index: 6, kind: input, shape index: {}]
  %s7 = inlined_call_operand.vmem [shape: f32[19,128], index: 7, kind: output, shape index: {}]
  %s8 = sld [smem:[#allocation0]]
  $region38: #{_lambda_.7} parent=0
    _
  %s10 = ssub.s32 1, %s8
  %s11 = scalar_select 0, %s10, %s8
  // Predicated region
  $region2: #{_lambda_.7} parent=0 // pred_check
    _
  $region3: #{_lambda_.7} parent=0 // pred_check_branch
    %13 = sbr.rel (0) target = $region5
  $region4: #{_lambda_.7} parent=0 // pred_region
    _
  $region5: #{_lambda_.7} parent=0 // pred_fallthru
    _
  // Predicated region
  $region6: #{_lambda_.7} parent=0 // pred_check
    _
  $region7: #{_lambda_.7} parent=0 // pred_check_branch
    %15 = sbr.rel (0) target = $region9
  $region8: #{_lambda_.7} parent=0 // pred_region
    _
  $region9: #{_lambda_.7} parent=0 // pred_fallthru
    _
  // Predicated region
  $region10: #{_lambda_.7} parent=0 // pred_check
    _
  $region11: #{_lambda_.7} parent=0 // pred_check_branch
    %17 = sbr.rel (0) target = $region13
  $region12: #{_lambda_.7} parent=0 // pred_region
    _
  $region13: #{_lambda_.7} parent=0 // pred_fallthru
    _
  // Predicated region
  $region14: #{_lambda_.7} parent=0 // pred_check
    _
  $region15: #{_lambda_.7} parent=0 // pred_check_branch
    %19 = sbr.rel (0) target = $region17
  $region16: #{_lambda_.7} parent=0 // pred_region
    _
  $region17: #{_lambda_.7} parent=0 // pred_fallthru
    _
  // Predicated region
  $region18: #{_lambda_.7} parent=0 // pred_check
    _
  $region19: #{_lambda_.7} parent=0 // pred_check_branch
    %21 = sbr.rel (0) target = $region21
  $region20: #{_lambda_.7} parent=0 // pred_region
    _
  $region21: #{_lambda_.7} parent=0 // pred_fallthru
    _
  // Predicated region
  $region22: #{_lambda_.7} parent=0 // pred_check
    _
  $region23: #{_lambda_.7} parent=0 // pred_check_branch
    %23 = sbr.rel (0) target = $region25
  $region24: #{_lambda_.7} parent=0 // pred_region
    _
  $region25: #{_lambda_.7} parent=0 // pred_fallthru
    _
  // Predicated region
  $region26: #{_lambda_.7} parent=0 // pred_check
    _
  $region27: #{_lambda_.7} parent=0 // pred_check_branch
    %25 = sbr.rel (0) target = $region29
  $region28: #{_lambda_.7} parent=0 // pred_region
    _
  $region29: #{_lambda_.7} parent=0 // pred_fallthru
    _
  %v27 = vld [vmem:[%s0] sm:$0xff]
  %v28 = vld [vmem:[%s0 + $0x8] sm:$0xff]
  %v29 = vpack.c.bf16 %v28, %v27
  %v30 = vld [vmem:[%s1] sm:$0xff]
  %v31 = vld [vmem:[%s1 + $0x8] sm:$0xff]
  %v32 = vpack.c.bf16 %v31, %v30
  %v33 = vld [vmem:[%s2] sm:$0xf]
  %v34 = vld [vmem:[%s2 + $0x4] sm:$0xf]
  %v35 = vld [vmem:[%s3] sm:$0xf]
  %v36 = vld [vmem:[%s3 + $0x4] sm:$0xf]
  %v39 = vunpack.c.l.b16 %v35
  %v40 = vunpack.c.l.b16 %v36
  %v41 = vpack.c.b16 %v40, %v39
  %vm42 = vcmask 130048
  %v44 = vsel %vm42, %v41, 0
  %46 = vmatprep.subr.bf16.mxu0 0
  %47 = vmatpush1.bf16.msra.mxu0 %v32
  %48 = vmatprep.subr.bf16.mxu0 0
  %49 = vmatpush1.bf16.msra.mxu0 0
  %50 = vmatprep.subr.bf16.mxu0 0
  %51 = vmatpush1.bf16.msra.mxu0 0
  %52 = vmatprep.subr.bf16.mxu0 0
  %53 = vmatpush1.bf16.msra.mxu0 0
  %54 = vmatprep.subr.bf16.mxu0 0
  %55 = vmatpush1.bf16.msra.mxu0 0
  %56 = vmatprep.subr.bf16.mxu0 0
  %57 = vmatpush1.bf16.msra.mxu0 0
  %58 = vmatprep.subr.bf16.mxu0 0
  %59 = vmatpush1.bf16.msra.mxu0 0
  %60 = vmatprep.subr.bf16.mxu0 0
  %61 = vmatpush1.bf16.msra.mxu0 0
  %62 = vmatprep.subr.bf16.mxu0 0
  %63 = vmatpush1.bf16.msra.mxu0 0
  %64 = vmatprep.subr.bf16.mxu0 0
  %65 = vmatpush1.bf16.msra.mxu0 0
  %66 = vmatprep.subr.bf16.mxu0 0
  %67 = vmatpush1.bf16.msra.mxu0 0
  %68 = vmatprep.subr.bf16.mxu0 0
  %69 = vmatpush1.bf16.msra.mxu0 0
  %70 = vmatprep.subr.bf16.mxu0 0
  %71 = vmatpush1.bf16.msra.mxu0 0
  %72 = vmatprep.subr.bf16.mxu0 0
  %73 = vmatpush1.bf16.msra.mxu0 0
  %74 = vmatprep.subr.bf16.mxu0 0
  %75 = vmatpush1.bf16.msra.mxu0 0
  %76 = vmatprep.subr.bf16.mxu0 0
  %77 = vmatpush1.bf16.msra.mxu0 0
  %78 = vmatprep.mubr.bf16.mxu0 0
  %79 = vmatmul.mubr.bf16.gmra.mrb[0].mxu0 %v44
  %v80 = vpop.f32.mrb[0].mxu0
  %v81 = vadd.f32 0.0, %v80
  %v82 = vpop.f32.mrb[0].mxu0
  %v83 = vpop.f32.mrb[0].mxu0
  %v84 = vadd.f32 0.0, %v83
  %v85 = vpop.f32.mrb[0].mxu0
  %86 = vdwg.mxu0
  %v89 = vunpack.c.l.b16 %v33
  %v90 = vunpack.c.l.b16 %v34
  %v91 = vpack.c.b16 %v90, %v89
  %v93 = vsel %vm42, %v91, 0
  %95 = vmatprep.subr.bf16.mxu0 0
  %96 = vmatpush1.bf16.msra.mxu0 %v29
  %97 = vmatprep.subr.bf16.mxu0 0
  %98 = vmatpush1.bf16.msra.mxu0 0
  %99 = vmatprep.subr.bf16.mxu0 0
  %100 = vmatpush1.bf16.msra.mxu0 0
  %101 = vmatprep.subr.bf16.mxu0 0
  %102 = vmatpush1.bf16.msra.mxu0 0
  %103 = vmatprep.subr.bf16.mxu0 0
  %104 = vmatpush1.bf16.msra.mxu0 0
  %105 = vmatprep.subr.bf16.mxu0 0
  %106 = vmatpush1.bf16.msra.mxu0 0
  %107 = vmatprep.subr.bf16.mxu0 0
  %108 = vmatpush1.bf16.msra.mxu0 0
  %109 = vmatprep.subr.bf16.mxu0 0
  %110 = vmatpush1.bf16.msra.mxu0 0
  %111 = vmatprep.subr.bf16.mxu0 0
  %112 = vmatpush1.bf16.msra.mxu0 0
  %113 = vmatprep.subr.bf16.mxu0 0
  %114 = vmatpush1.bf16.msra.mxu0 0
  %115 = vmatprep.subr.bf16.mxu0 0
  %116 = vmatpush1.bf16.msra.mxu0 0
  %117 = vmatprep.subr.bf16.mxu0 0
  %118 = vmatpush1.bf16.msra.mxu0 0
  %119 = vmatprep.subr.bf16.mxu0 0
  %120 = vmatpush1.bf16.msra.mxu0 0
  %121 = vmatprep.subr.bf16.mxu0 0
  %122 = vmatpush1.bf16.msra.mxu0 0
  %123 = vmatprep.subr.bf16.mxu0 0
  %124 = vmatpush1.bf16.msra.mxu0 0
  %125 = vmatprep.subr.bf16.mxu0 0
  %126 = vmatpush1.bf16.msra.mxu0 0
  %127 = vmatprep.mubr.bf16.mxu0 0
  %128 = vmatmul.mubr.bf16.gmra.mrb[0].mxu0 %v93
  %v129 = vpop.f32.mrb[0].mxu0
  %v130 = vadd.f32 %v81, %v129
  %v131 = vpop.f32.mrb[0].mxu0
  %v132 = vpop.f32.mrb[0].mxu0
  %v133 = vadd.f32 %v84, %v132
  %v134 = vpop.f32.mrb[0].mxu0
  %135 = vdwg.mxu0
  %v136 = vld [vmem:[%s4] sm:$0xff]
  %v137 = vld [vmem:[%s4 + $0x8] sm:$0xff]
  %139 = vset.pattern.permute.xlu0 0
  %140 = vperm.xlu0 %139, %v136
  %v141 = vpop.permute.xlu0 %140
  %144 = vset.pattern.permute.xlu0 0
  %145 = vperm.xlu0 %144, %v137
  %v146 = vpop.permute.xlu0 %145
  %v148 = vadd.f32 %v130, %v141
  %v149 = vadd.f32 %v133, %v146
  %v150 = vxor.u32 %v148, 2147483648
  %v151 = vxor.u32 %v149, 2147483648
  %v152 = vmul.f32 %v150, 1.442695
  %v153 = vpow.pop %v152
  %v154 = vmul.f32 %v151, 1.442695
  %v155 = vpow.pop %v154
  %v156 = vadd.f32 %v153, 1.0
  %v157 = vadd.f32 %v155, 1.0
  %v158 = vrcp.pop %v156
  %v159 = vmul.f32 1.0, %v158
  %v160 = vrcp.pop %v157
  %v161 = vmul.f32 1.0, %v160
  %v162 = vmul.f32 %v148, %v159
  %v163 = vmul.f32 %v149, %v161
  %v164 = vpack.c.bf16 %v163, %v162
  %v165 = vld [vmem:[%s5] sm:$0xf]
  %v166 = vld [vmem:[%s5 + $0x4] sm:$0xf]
  %v167 = vld [vmem:[%s5 + $0x8] sm:$0x3]
  %v168 = vld [vmem:[%s6] sm:$0xff]
  %v169 = vld [vmem:[%s6 + $0x8] sm:$0xff]
  %v170 = vld [vmem:[%s6 + $0x10] sm:$0x7]
  %172 = vset.pattern.permute.xlu0 0
  %173 = vperm.xlu0 %172, %v168
  %v174 = vpop.permute.xlu0 %173
  %177 = vset.pattern.permute.xlu0 0
  %178 = vperm.xlu0 %177, %v169
  %v179 = vpop.permute.xlu0 %178
  %182 = vset.pattern.permute.xlu0 0
  %183 = vperm.xlu0 %182, %v170
  %v184 = vpop.permute.xlu0 %183
  %v189 = vunpack.c.l.b16 %v165
  %v190 = vunpack.c.l.b16 %v166
  %v191 = vunpack.c.l.b16 %v167
  %v192 = vpack.c.b16 %v190, %v189
  %v193 = vpack.c.b16 %v191, %v191
  %v195 = vsel %vm42, %v192, 0
  %v198 = vsel %vm42, %v193, 0
  %200 = vmatprep.subr.bf16.mxu0 0
  %201 = vmatpush1.bf16.msra.mxu0 %v164
  %202 = vmatprep.subr.bf16.mxu0 0
  %203 = vmatpush1.bf16.msra.mxu0 0
  %204 = vmatprep.subr.bf16.mxu0 0
  %205 = vmatpush1.bf16.msra.mxu0 0
  %206 = vmatprep.subr.bf16.mxu0 0
  %207 = vmatpush1.bf16.msra.mxu0 0
  %208 = vmatprep.subr.bf16.mxu0 0
  %209 = vmatpush1.bf16.msra.mxu0 0
  %210 = vmatprep.subr.bf16.mxu0 0
  %211 = vmatpush1.bf16.msra.mxu0 0
  %212 = vmatprep.subr.bf16.mxu0 0
  %213 = vmatpush1.bf16.msra.mxu0 0
  %214 = vmatprep.subr.bf16.mxu0 0
  %215 = vmatpush1.bf16.msra.mxu0 0
  %216 = vmatprep.subr.bf16.mxu0 0
  %217 = vmatpush1.bf16.msra.mxu0 0
  %218 = vmatprep.subr.bf16.mxu0 0
  %219 = vmatpush1.bf16.msra.mxu0 0
  %220 = vmatprep.subr.bf16.mxu0 0
  %221 = vmatpush1.bf16.msra.mxu0 0
  %222 = vmatprep.subr.bf16.mxu0 0
  %223 = vmatpush1.bf16.msra.mxu0 0
  %224 = vmatprep.subr.bf16.mxu0 0
  %225 = vmatpush1.bf16.msra.mxu0 0
  %226 = vmatprep.subr.bf16.mxu0 0
  %227 = vmatpush1.bf16.msra.mxu0 0
  %228 = vmatprep.subr.bf16.mxu0 0
  %229 = vmatpush1.bf16.msra.mxu0 0
  %230 = vmatprep.subr.bf16.mxu0 0
  %231 = vmatpush1.bf16.msra.mxu0 0
  %232 = vmatprep.mubr.bf16.mxu0 0
  %233 = vmatmul.mubr.bf16.gmra.mrb[0].mxu0 %v195
  %v234 = vpop.f32.mrb[0].mxu0
  %v235 = vadd.f32 %v174, %v234
  %v236 = vpop.f32.mrb[0].mxu0
  %v237 = vpop.f32.mrb[0].mxu0
  %v238 = vadd.f32 %v179, %v237
  %v239 = vpop.f32.mrb[0].mxu0
  %240 = vmatprep.mubr.bf16.mxu0 0
  %241 = vmatmul.mubr.bf16.gmra.mrb[0].mxu0 %v198
  %v242 = vpop.f32.mrb[0].mxu0
  %v243 = vadd.f32 %v184, %v242
  %v244 = vpop.f32.mrb[0].mxu0
  %v245 = vpop.f32.mrb[0].mxu0
  %v246 = vpop.f32.mrb[0].mxu0
  %247 = vdwg.mxu0
  %248 = vst [vmem:[%s7] sm:$0xff] %v235
  %249 = vst [vmem:[%s7 + $0x8] sm:$0xff] %v238
  %250 = vst [vmem:[%s7 + $0x10] sm:$0x7] %v243
  // Predicated region
  $region30: #{_lambda_.7} parent=0 // pred_check
    _
  $region31: #{_lambda_.7} parent=0 // pred_check_branch
    %252 = sbr.rel (0) target = $region33
  $region32: #{_lambda_.7} parent=0 // pred_region
    _
  $region33: #{_lambda_.7} parent=0 // pred_fallthru
    _
  // Predicated region
  $region34: #{_lambda_.7} parent=0 // pred_check
    _
  $region35: #{_lambda_.7} parent=0 // pred_check_branch
    %254 = sbr.rel (0) target = $region37
  $region36: #{_lambda_.7} parent=0 // pred_region
    _
  $region37: #{_lambda_.7} parent=0 // pred_fallthru
    _

// kernel: _lambda_.6
$region0: #{_lambda_.6}
  #allocation0 [shape = 'u32[]', space=smem, size = 0x4, offset = 0x4, fixed_abs, tag = 'smem constant byte address 0x4 - core index']
  #allocation1 [shape = 'u32[144,128]{1,0:T(1,128)}', space=vmem, size = 0x12000, scoped, tag = 'internal scratch']
  %s0 = inlined_call_operand.vmem [shape: f32[8,512], index: 0, kind: input, shape index: {}]
  %s1 = inlined_call_operand.vmem [shape: f32[8,512], index: 1, kind: input, shape index: {}]
  %s2 = inlined_call_operand.vmem [shape: bf16[8,8], index: 2, kind: input, shape index: {}]
  %s3 = inlined_call_operand.vmem [shape: bf16[8,8], index: 3, kind: input, shape index: {}]
  %s4 = inlined_call_operand.vmem [shape: f32[8,1], index: 4, kind: input, shape index: {}]
  %s5 = inlined_call_operand.vmem [shape: bf16[19,8], index: 5, kind: input, shape index: {}]
  %s6 = inlined_call_operand.vmem [shape: f32[19,1], index: 6, kind: input, shape index: {}]
  %s7 = inlined_call_operand.vmem [shape: f32[19,512], index: 7, kind: output, shape index: {}]
  %s8 = sld [smem:[#allocation0]]
  $region80: #{_lambda_.6} parent=0
    _
  %s10 = ssub.s32 1, %s8
  %s11 = scalar_select 0, %s10, %s8
  $region1: #{_lambda_.6} parent=0
    #allocation2 [shape = 'u8[49152]{0}', space=vmem, size = 0xc000, scoped, tag = 'output window, operand 0']
    loop: start=0, step=1, limit=4
    $region2: #{_lambda_.6} parent=1 // loop_pre_header
      _
    $region3: #{_lambda_.6} parent=1 // loop_header
      %s13 = sphi 0, %s17
      %p14 = scmp.ge.s32.totalorder %s13, 4
      %s23 = sphi 0, %s25
      %s26 = sphi 0, %s23
      %s27 = sphi 0, %s26
      %s43 = sphi 0, %s27
      %s49 = sphi 0, %s51
      %s52 = sphi 0, %s49
      %s53 = sphi 0, %s52
      %s69 = sphi 0, %s53
      %s73 = sphi 0, %s73
      %s75 = sphi 0, %s73
      %s76 = sphi 0, %s75
      %s90 = sphi 0, %s76
      %s94 = sphi 0, %s94
      %s96 = sphi 0, %s94
      %s97 = sphi 0, %s96
      %s111 = sphi 0, %s97
      %s115 = sphi 0, %s115
      %s117 = sphi 0, %s115
      %s118 = sphi 0, %s117
      %s132 = sphi 0, %s118
      %s136 = sphi 0, %s136
      %s138 = sphi 0, %s136
      %s139 = sphi 0, %s138
      %s153 = sphi 0, %s139
      %s157 = sphi 0, %s157
      %s159 = sphi 0, %s157
      %s160 = sphi 0, %s159
      %s174 = sphi 0, %s160
      %s180 = sphi 0, %s182
      %s183 = sphi 0, %s180
      %s184 = sphi 0, %s183
      %s200 = sphi 0, %s184
    $region4: #{_lambda_.6} parent=1 // loop_header_branch
      %16 = sbr.rel (%p14) target = $region8
    $region5: #{_lambda_.6} parent=1 // loop_body
      %s18 = ssub.s32 %s13, 1
      %s19 = ssub.s32 %s13, 2
      %s20 = sadd.s32 %s13, 1
      %s21 = ssub.s32 %s13, %s20
      %p22 = scmp.eq.s32.totalorder %s21, 0
      %s24 = sadd.s32 %s23, 1
      %s25 = scalar_select %p22, %s23, %s24
      %p28 = pneg %p22
      %p29 = scmp.eq.s32.totalorder %s13, 1
      %p30 = por %p28, %p29
      %p31 = scmp.ne.s32.totalorder %s23, %s26
      %p32 = scmp.eq.s32.totalorder %s13, 0
      %p33 = por %p31, %p32
      %p34 = scmp.ne.s32.totalorder %s23, %s26
      %p35 = scmp.eq.s32.totalorder %s18, 1
      %p36 = por %p34, %p35
      %p37 = scmp.ne.s32.totalorder %s26, %s27
      %p38 = scmp.eq.s32.totalorder %s18, 0
      %p39 = por %p37, %p38
      %p40 = scmp.ne.s32.totalorder %s26, %s27
      %p41 = scmp.eq.s32.totalorder %s19, 1
      %p42 = por %p40, %p41
      %p44 = scmp.ne.s32.totalorder %s27, %s43
      %p45 = scmp.eq.s32.totalorder %s19, 0
      %p46 = por %p44, %p45
      %s47 = ssub.s32 %s13, %s20
      %p48 = scmp.eq.s32.totalorder %s47, 0
      %s50 = sadd.s32 %s49, 1
      %s51 = scalar_select %p48, %s49, %s50
      %p54 = pneg %p48
      %p55 = scmp.eq.s32.totalorder %s13, 1
      %p56 = por %p54, %p55
      %p57 = scmp.ne.s32.totalorder %s49, %s52
      %p58 = scmp.eq.s32.totalorder %s13, 0
      %p59 = por %p57, %p58
      %p60 = scmp.ne.s32.totalorder %s49, %s52
      %p61 = scmp.eq.s32.totalorder %s18, 1
      %p62 = por %p60, %p61
      %p63 = scmp.ne.s32.totalorder %s52, %s53
      %p64 = scmp.eq.s32.totalorder %s18, 0
      %p65 = por %p63, %p64
      %p66 = scmp.ne.s32.totalorder %s52, %s53
      %p67 = scmp.eq.s32.totalorder %s19, 1
      %p68 = por %p66, %p67
      %p70 = scmp.ne.s32.totalorder %s53, %s69
      %p71 = scmp.eq.s32.totalorder %s19, 0
      %p72 = por %p70, %p71
      %s74 = sadd.s32 %s73, 1
      %p77 = scmp.eq.s32.totalorder %s13, 1
      %p78 = scmp.ne.s32.totalorder %s73, %s75
      %p79 = scmp.eq.s32.totalorder %s13, 0
      %p80 = por %p78, %p79
      %p81 = scmp.ne.s32.totalorder %s73, %s75
      %p82 = scmp.eq.s32.totalorder %s18, 1
      %p83 = por %p81, %p82
      %p84 = scmp.ne.s32.totalorder %s75, %s76
      %p85 = scmp.eq.s32.totalorder %s18, 0
      %p86 = por %p84, %p85
      %p87 = scmp.ne.s32.totalorder %s75, %s76
      %p88 = scmp.eq.s32.totalorder %s19, 1
      %p89 = por %p87, %p88
      %p91 = scmp.ne.s32.totalorder %s76, %s90
      %p92 = scmp.eq.s32.totalorder %s19, 0
      %p93 = por %p91, %p92
      %s95 = sadd.s32 %s94, 1
      %p98 = scmp.eq.s32.totalorder %s13, 1
      %p99 = scmp.ne.s32.totalorder %s94, %s96
      %p100 = scmp.eq.s32.totalorder %s13, 0
      %p101 = por %p99, %p100
      %p102 = scmp.ne.s32.totalorder %s94, %s96
      %p103 = scmp.eq.s32.totalorder %s18, 1
      %p104 = por %p102, %p103
      %p105 = scmp.ne.s32.totalorder %s96, %s97
      %p106 = scmp.eq.s32.totalorder %s18, 0
      %p107 = por %p105, %p106
      %p108 = scmp.ne.s32.totalorder %s96, %s97
      %p109 = scmp.eq.s32.totalorder %s19, 1
      %p110 = por %p108, %p109
      %p112 = scmp.ne.s32.totalorder %s97, %s111
      %p113 = scmp.eq.s32.totalorder %s19, 0
      %p114 = por %p112, %p113
      %s116 = sadd.s32 %s115, 1
      %p119 = scmp.eq.s32.totalorder %s13, 1
      %p120 = scmp.ne.s32.totalorder %s115, %s117
      %p121 = scmp.eq.s32.totalorder %s13, 0
      %p122 = por %p120, %p121
      %p123 = scmp.ne.s32.totalorder %s115, %s117
      %p124 = scmp.eq.s32.totalorder %s18, 1
      %p125 = por %p123, %p124
      %p126 = scmp.ne.s32.totalorder %s117, %s118
      %p127 = scmp.eq.s32.totalorder %s18, 0
      %p128 = por %p126, %p127
      %p129 = scmp.ne.s32.totalorder %s117, %s118
      %p130 = scmp.eq.s32.totalorder %s19, 1
      %p131 = por %p129, %p130
      %p133 = scmp.ne.s32.totalorder %s118, %s132
      %p134 = scmp.eq.s32.totalorder %s19, 0
      %p135 = por %p133, %p134
      %s137 = sadd.s32 %s136, 1
      %p140 = scmp.eq.s32.totalorder %s13, 1
      %p141 = scmp.ne.s32.totalorder %s136, %s138
      %p142 = scmp.eq.s32.totalorder %s13, 0
      %p143 = por %p141, %p142
      %p144 = scmp.ne.s32.totalorder %s136, %s138
      %p145 = scmp.eq.s32.totalorder %s18, 1
      %p146 = por %p144, %p145
      %p147 = scmp.ne.s32.totalorder %s138, %s139
      %p148 = scmp.eq.s32.totalorder %s18, 0
      %p149 = por %p147, %p148
      %p150 = scmp.ne.s32.totalorder %s138, %s139
      %p151 = scmp.eq.s32.totalorder %s19, 1
      %p152 = por %p150, %p151
      %p154 = scmp.ne.s32.totalorder %s139, %s153
      %p155 = scmp.eq.s32.totalorder %s19, 0
      %p156 = por %p154, %p155
      %s158 = sadd.s32 %s157, 1
      %p161 = scmp.eq.s32.totalorder %s13, 1
      %p162 = scmp.ne.s32.totalorder %s157, %s159
      %p163 = scmp.eq.s32.totalorder %s13, 0
      %p164 = por %p162, %p163
      %p165 = scmp.ne.s32.totalorder %s157, %s159
      %p166 = scmp.eq.s32.totalorder %s18, 1
      %p167 = por %p165, %p166
      %p168 = scmp.ne.s32.totalorder %s159, %s160
      %p169 = scmp.eq.s32.totalorder %s18, 0
      %p170 = por %p168, %p169
      %p171 = scmp.ne.s32.totalorder %s159, %s160
      %p172 = scmp.eq.s32.totalorder %s19, 1
      %p173 = por %p171, %p172
      %p175 = scmp.ne.s32.totalorder %s160, %s174
      %p176 = scmp.eq.s32.totalorder %s19, 0
      %p177 = por %p175, %p176
      %s178 = ssub.s32 %s13, %s20
      %p179 = scmp.eq.s32.totalorder %s178, 0
      %s181 = sadd.s32 %s180, 1
      %s182 = scalar_select %p179, %s180, %s181
      %p185 = pneg %p179
      %p186 = scmp.eq.s32.totalorder %s13, 1
      %p187 = por %p185, %p186
      %p188 = scmp.ne.s32.totalorder %s180, %s183
      %p189 = scmp.eq.s32.totalorder %s13, 0
      %p190 = por %p188, %p189
      %p191 = scmp.ne.s32.totalorder %s180, %s183
      %p192 = scmp.eq.s32.totalorder %s18, 1
      %p193 = por %p191, %p192
      %p194 = scmp.ne.s32.totalorder %s183, %s184
      %p195 = scmp.eq.s32.totalorder %s18, 0
      %p196 = por %p194, %p195
      %p197 = scmp.ne.s32.totalorder %s183, %s184
      %p198 = scmp.eq.s32.totalorder %s19, 1
      %p199 = por %p197, %p198
      %p201 = scmp.ne.s32.totalorder %s184, %s200
      %p202 = scmp.eq.s32.totalorder %s19, 0
      %p203 = por %p201, %p202
      %p204 = scmp.le.s32.totalorder 1, %s13
      %p205 = scmp.lt.s32.totalorder %s13, 3
      %p206 = pnand %p204, %p205
      %p207 = pneg %p206
      // Predicated region
      $region9: #{_lambda_.6} parent=5 // pred_check
        _
      $region10: #{_lambda_.6} parent=5 // pred_check_branch
        %209 = sbr.rel (%p206) target = $region12
      $region11: #{_lambda_.6} parent=5 // pred_region
        %s210 = ssub.s32 %s13, 1
        // Predicated region
        $region13: #{_lambda_.6} parent=11 // pred_check
          %p211 = pneg %p86
        $region14: #{_lambda_.6} parent=11 // pred_check_branch
          %213 = sbr.rel (%p211) target = $region16
        $region15: #{_lambda_.6} parent=11 // pred_region
          _
        $region16: #{_lambda_.6} parent=11 // pred_fallthru
          _
        // Predicated region
        $region17: #{_lambda_.6} parent=11 // pred_check
          %p214 = pneg %p107
        $region18: #{_lambda_.6} parent=11 // pred_check_branch
          %216 = sbr.rel (%p214) target = $region20
        $region19: #{_lambda_.6} parent=11 // pred_region
          _
        $region20: #{_lambda_.6} parent=11 // pred_fallthru
          _
        // Predicated region
        $region21: #{_lambda_.6} parent=11 // pred_check
          %p217 = pneg %p128
        $region22: #{_lambda_.6} parent=11 // pred_check_branch
          %219 = sbr.rel (%p217) target = $region24
        $region23: #{_lambda_.6} parent=11 // pred_region
          _
        $region24: #{_lambda_.6} parent=11 // pred_fallthru
          _
        // Predicated region
        $region25: #{_lambda_.6} parent=11 // pred_check
          %p220 = pneg %p149
        $region26: #{_lambda_.6} parent=11 // pred_check_branch
          %222 = sbr.rel (%p220) target = $region28
        $region27: #{_lambda_.6} parent=11 // pred_region
          _
        $region28: #{_lambda_.6} parent=11 // pred_fallthru
          _
        // Predicated region
        $region29: #{_lambda_.6} parent=11 // pred_check
          %p223 = pneg %p170
        $region30: #{_lambda_.6} parent=11 // pred_check_branch
          %225 = sbr.rel (%p223) target = $region32
        $region31: #{_lambda_.6} parent=11 // pred_region
          _
        $region32: #{_lambda_.6} parent=11 // pred_fallthru
          _
      $region12: #{_lambda_.6} parent=5 // pred_fallthru
        _
      %p226 = scmp.lt.s32.totalorder %s13, 2
      // Predicated region
      $region33: #{_lambda_.6} parent=5 // pred_check
        %p227 = pneg %p226
      $region34: #{_lambda_.6} parent=5 // pred_check_branch
        %229 = sbr.rel (%p227) target = $region36
      $region35: #{_lambda_.6} parent=5 // pred_region
        // Predicated region
        $region37: #{_lambda_.6} parent=35 // pred_check
          %p230 = pneg %p33
        $region38: #{_lambda_.6} parent=35 // pred_check_branch
          %232 = sbr.rel (%p230) target = $region40
        $region39: #{_lambda_.6} parent=35 // pred_region
          %s233 = smul.u32 2, %s13
          %p234 = scmp.lt.s32.totalorder %s233, 3
          %s235 = scalar_select %p234, %s233, 3
          %s236 = smul.addr %s235, 8
          %s237 = scalar_lea.vmem %s0, %s236
          %s238 = smul.u32 2, %s13
        $region40: #{_lambda_.6} parent=35 // pred_fallthru
          _
        // Predicated region
        $region41: #{_lambda_.6} parent=35 // pred_check
          %p239 = pneg %p59
        $region42: #{_lambda_.6} parent=35 // pred_check_branch
          %241 = sbr.rel (%p239) target = $region44
        $region43: #{_lambda_.6} parent=35 // pred_region
          %s242 = smul.u32 2, %s13
          %p243 = scmp.lt.s32.totalorder %s242, 3
          %s244 = scalar_select %p243, %s242, 3
          %s245 = smul.addr %s244, 8
          %s246 = scalar_lea.vmem %s1, %s245
          %s247 = smul.u32 2, %s13
        $region44: #{_lambda_.6} parent=35 // pred_fallthru
          _
      $region36: #{_lambda_.6} parent=5 // pred_fallthru
        _
      %p248 = scmp.le.s32.totalorder 1, %s13
      %p249 = scmp.lt.s32.totalorder %s13, 3
      %p250 = pnand %p248, %p249
      %p251 = pneg %p250
      // Predicated region
      $region45: #{_lambda_.6} parent=5 // pred_check
        _
      $region46: #{_lambda_.6} parent=5 // pred_check_branch
        %253 = sbr.rel (%p250) target = $region48
      $region47: #{_lambda_.6} parent=5 // pred_region
        %s254 = ssub.s32 %s13, 1
        %s255 = smul.u32 2, %s18
        %p256 = scmp.lt.s32.totalorder %s255, 3
        %s257 = scalar_select %p256, %s255, 3
        %s258 = smul.addr %s257, 8
        %s259 = scalar_lea.vmem %s0, %s258
        %p260 = pneg %p39
        %p261 = pneg %p36
        %s262 = smul.u32 2, %s18
        %p263 = scmp.lt.s32.totalorder %s262, 3
        %s264 = scalar_select %p263, %s262, 3
        %s265 = smul.addr %s264, 8
        %s266 = scalar_lea.vmem %s1, %s265
        %p267 = pneg %p65
        %p268 = pneg %p62
        %p269 = pneg %p86
        %p270 = pneg %p83
        %p271 = pneg %p107
        %p272 = pneg %p104
        %p273 = pneg %p128
        %p274 = pneg %p125
        %p275 = pneg %p149
        %p276 = pneg %p146
        %p277 = pneg %p170
        %p278 = pneg %p167
        %p279 = pneg %p196
        %p280 = pneg %p193
        %s281 = sand.u32 %s183, 1
        %s282 = sand.u32 %s183, 1
        %s283 = smul.addr %s282, 48
        %s284 = scalar_lea.vmem [#allocation2], %s283
        %s285 = smul.u32 2, %s18
        %p286 = scmp.lt.s32.totalorder %s285, 3
        %s287 = scalar_select %p286, %s285, 3
        %s288 = smul.addr %s287, 8
        %s289 = scalar_lea.vmem %s0, %s288
        %s290 = smul.u32 2, %s18
        %s291 = smul.u32 2, %s18
        %p292 = scmp.lt.s32.totalorder %s291, 3
        %s293 = scalar_select %p292, %s291, 3
        %s294 = smul.addr %s293, 8
        %s295 = scalar_lea.vmem %s1, %s294
        %s296 = smul.u32 2, %s18
        %s297 = smul.u32 2, %s18
        %v299 = vld [vmem:[%s289] sm:$0xff]
        %v300 = vld [vmem:[%s289 + $0x8] sm:$0xff]
        %v301 = vpack.c.bf16 %v299, %v299
        %v302 = vpack.c.bf16 %v300, %v300
        %v303 = vld [vmem:[%s295] sm:$0xff]
        %v304 = vld [vmem:[%s295 + $0x8] sm:$0xff]
        %v305 = vpack.c.bf16 %v303, %v303
        %v306 = vpack.c.bf16 %v304, %v304
        %v307 = vld [vmem:[%s2] sm:$0xf]
        %v308 = vld [vmem:[%s3] sm:$0xf]
        %vm309 = vcmask 64512
        %v311 = vsel %vm309, %v308, 0
        %vm313 = vcmask 1043456
        %v315 = vsel %vm313, %v305, 0
        %v318 = vsel %vm313, %v306, 0
        %320 = vmatprep.subr.bf16.mxu0 %v318
        %321 = vmatpush1.bf16.msra.mxu0 %v315
        %322 = vmatprep.subr.bf16.mxu0 0
        %323 = vmatpush1.bf16.msra.mxu0 0
        %324 = vmatprep.subr.bf16.mxu0 0
        %325 = vmatpush1.bf16.msra.mxu0 0
        %326 = vmatprep.subr.bf16.mxu0 0
        %327 = vmatpush1.bf16.msra.mxu0 0
        %328 = vmatprep.subr.bf16.mxu0 0
        %329 = vmatpush1.bf16.msra.mxu0 0
        %330 = vmatprep.subr.bf16.mxu0 0
        %331 = vmatpush1.bf16.msra.mxu0 0
        %332 = vmatprep.subr.bf16.mxu0 0
        %333 = vmatpush1.bf16.msra.mxu0 0
        %334 = vmatprep.subr.bf16.mxu0 0
        %335 = vmatpush1.bf16.msra.mxu0 0
        %336 = vmatprep.subr.bf16.mxu0 0
        %337 = vmatpush1.bf16.msra.mxu0 0
        %338 = vmatprep.subr.bf16.mxu0 0
        %339 = vmatpush1.bf16.msra.mxu0 0
        %340 = vmatprep.subr.bf16.mxu0 0
        %341 = vmatpush1.bf16.msra.mxu0 0
        %342 = vmatprep.subr.bf16.mxu0 0
        %343 = vmatpush1.bf16.msra.mxu0 0
        %344 = vmatprep.subr.bf16.mxu0 0
        %345 = vmatpush1.bf16.msra.mxu0 0
        %346 = vmatprep.subr.bf16.mxu0 0
        %347 = vmatpush1.bf16.msra.mxu0 0
        %348 = vmatprep.subr.bf16.mxu0 0
        %349 = vmatpush1.bf16.msra.mxu0 0
        %350 = vmatprep.subr.bf16.mxu0 0
        %351 = vmatpush1.bf16.msra.mxu0 0
        %352 = vmatprep.mubr.bf16.mxu0 0
        %353 = vmatmul.mubr.bf16.gmra.mrb[0].mxu0 %v311
        %v354 = vpop.f32.mrb[0].mxu0
        %v355 = vadd.f32 0.0, %v354
        %v356 = vpop.f32.mrb[0].mxu0
        %v357 = vadd.f32 0.0, %v356
        %v358 = vpop.f32.mrb[0].mxu0
        %v359 = vpop.f32.mrb[0].mxu0
        %360 = vdwg.mxu0
        %v362 = vsel %vm309, %v307, 0
        %v365 = vsel %vm313, %v301, 0
        %v368 = vsel %vm313, %v302, 0
        %370 = vmatprep.subr.bf16.mxu0 %v368
        %371 = vmatpush1.bf16.msra.mxu0 %v365
        %372 = vmatprep.subr.bf16.mxu0 0
        %373 = vmatpush1.bf16.msra.mxu0 0
        %374 = vmatprep.subr.bf16.mxu0 0
        %375 = vmatpush1.bf16.msra.mxu0 0
        %376 = vmatprep.subr.bf16.mxu0 0
        %377 = vmatpush1.bf16.msra.mxu0 0
        %378 = vmatprep.subr.bf16.mxu0 0
        %379 = vmatpush1.bf16.msra.mxu0 0
        %380 = vmatprep.subr.bf16.mxu0 0
        %381 = vmatpush1.bf16.msra.mxu0 0
        %382 = vmatprep.subr.bf16.mxu0 0
        %383 = vmatpush1.bf16.msra.mxu0 0
        %384 = vmatprep.subr.bf16.mxu0 0
        %385 = vmatpush1.bf16.msra.mxu0 0
        %386 = vmatprep.subr.bf16.mxu0 0
        %387 = vmatpush1.bf16.msra.mxu0 0
        %388 = vmatprep.subr.bf16.mxu0 0
        %389 = vmatpush1.bf16.msra.mxu0 0
        %390 = vmatprep.subr.bf16.mxu0 0
        %391 = vmatpush1.bf16.msra.mxu0 0
        %392 = vmatprep.subr.bf16.mxu0 0
        %393 = vmatpush1.bf16.msra.mxu0 0
        %394 = vmatprep.subr.bf16.mxu0 0
        %395 = vmatpush1.bf16.msra.mxu0 0
        %396 = vmatprep.subr.bf16.mxu0 0
        %397 = vmatpush1.bf16.msra.mxu0 0
        %398 = vmatprep.subr.bf16.mxu0 0
        %399 = vmatpush1.bf16.msra.mxu0 0
        %400 = vmatprep.subr.bf16.mxu0 0
        %401 = vmatpush1.bf16.msra.mxu0 0
        %402 = vmatprep.mubr.bf16.mxu0 0
        %403 = vmatmul.mubr.bf16.gmra.mrb[0].mxu0 %v362
        %v404 = vpop.f32.mrb[0].mxu0
        %v405 = vadd.f32 %v355, %v404
        %v406 = vpop.f32.mrb[0].mxu0
        %v407 = vadd.f32 %v357, %v406
        %v408 = vpop.f32.mrb[0].mxu0
        %v409 = vpop.f32.mrb[0].mxu0
        %410 = vdwg.mxu0
        %v411 = vld [vmem:[%s4] sm:$0xff]
        %413 = vset.pattern.permute.xlu0 0
        %414 = vperm.xlu0 %413, %v411
        %v415 = vpop.permute.xlu0 %414
        %v417 = vadd.f32 %v405, %v415
        %v418 = vadd.f32 %v407, %v415
        %v419 = vxor.u32 %v417, 2147483648
        %v420 = vxor.u32 %v418, 2147483648
        %v421 = vmul.f32 %v419, 1.442695
        %v422 = vpow.pop %v421
        %v423 = vmul.f32 %v420, 1.442695
        %v424 = vpow.pop %v423
        %v425 = vadd.f32 %v422, 1.0
        %v426 = vadd.f32 %v424, 1.0
        %v427 = vrcp.pop %v425
        %v428 = vmul.f32 1.0, %v427
        %v429 = vrcp.pop %v426
        %v430 = vmul.f32 1.0, %v429
        %v431 = vmul.f32 %v417, %v428
        %v432 = vmul.f32 %v418, %v430
        %v433 = vpack.c.bf16 %v431, %v431
        %v434 = vpack.c.bf16 %v432, %v432
        %v435 = vld [vmem:[%s5] sm:$0xf]
        %v436 = vld [vmem:[%s5 + $0x4] sm:$0xf]
        %v437 = vld [vmem:[%s5 + $0x8] sm:$0x3]
        %v438 = vld [vmem:[%s6] sm:$0xff]
        %v439 = vld [vmem:[%s6 + $0x8] sm:$0xff]
        %v440 = vld [vmem:[%s6 + $0x10] sm:$0x7]
        %442 = vset.pattern.permute.xlu0 0
        %443 = vperm.xlu0 %442, %v438
        %v444 = vpop.permute.xlu0 %443
        %447 = vset.pattern.permute.xlu0 0
        %448 = vperm.xlu0 %447, %v439
        %v449 = vpop.permute.xlu0 %448
        %452 = vset.pattern.permute.xlu0 0
        %453 = vperm.xlu0 %452, %v440
        %v454 = vpop.permute.xlu0 %453
        %v459 = vunpack.c.l.b16 %v435
        %v460 = vunpack.c.l.b16 %v436
        %v461 = vunpack.c.l.b16 %v437
        %v462 = vpack.c.b16 %v460, %v459
        %v463 = vpack.c.b16 %v461, %v461
        %v465 = vsel %vm309, %v462, 0
        %v468 = vsel %vm309, %v463, 0
        %v471 = vsel %vm313, %v433, 0
        %v474 = vsel %vm313, %v434, 0
        %476 = vmatprep.subr.bf16.mxu0 %v474
        %477 = vmatpush1.bf16.msra.mxu0 %v471
        %478 = vmatprep.subr.bf16.mxu0 0
        %479 = vmatpush1.bf16.msra.mxu0 0
        %480 = vmatprep.subr.bf16.mxu0 0
        %481 = vmatpush1.bf16.msra.mxu0 0
        %482 = vmatprep.subr.bf16.mxu0 0
        %483 = vmatpush1.bf16.msra.mxu0 0
        %484 = vmatprep.subr.bf16.mxu0 0
        %485 = vmatpush1.bf16.msra.mxu0 0
        %486 = vmatprep.subr.bf16.mxu0 0
        %487 = vmatpush1.bf16.msra.mxu0 0
        %488 = vmatprep.subr.bf16.mxu0 0
        %489 = vmatpush1.bf16.msra.mxu0 0
        %490 = vmatprep.subr.bf16.mxu0 0
        %491 = vmatpush1.bf16.msra.mxu0 0
        %492 = vmatprep.subr.bf16.mxu0 0
        %493 = vmatpush1.bf16.msra.mxu0 0
        %494 = vmatprep.subr.bf16.mxu0 0
        %495 = vmatpush1.bf16.msra.mxu0 0
        %496 = vmatprep.subr.bf16.mxu0 0
        %497 = vmatpush1.bf16.msra.mxu0 0
        %498 = vmatprep.subr.bf16.mxu0 0
        %499 = vmatpush1.bf16.msra.mxu0 0
        %500 = vmatprep.subr.bf16.mxu0 0
        %501 = vmatpush1.bf16.msra.mxu0 0
        %502 = vmatprep.subr.bf16.mxu0 0
        %503 = vmatpush1.bf16.msra.mxu0 0
        %504 = vmatprep.subr.bf16.mxu0 0
        %505 = vmatpush1.bf16.msra.mxu0 0
        %506 = vmatprep.subr.bf16.mxu0 0
        %507 = vmatpush1.bf16.msra.mxu0 0
        %508 = vmatprep.mubr.bf16.mxu0 0
        %509 = vmatmul.mubr.bf16.gmra.mrb[0].mxu0 %v465
        %v510 = vpop.f32.mrb[0].mxu0
        %v511 = vadd.f32 %v444, %v510
        %v512 = vpop.f32.mrb[0].mxu0
        %v513 = vadd.f32 %v444, %v512
        %v514 = vpop.f32.mrb[0].mxu0
        %v515 = vadd.f32 %v449, %v514
        %v516 = vpop.f32.mrb[0].mxu0
        %v517 = vadd.f32 %v449, %v516
        %518 = vmatprep.mubr.bf16.mxu0 0
        %519 = vmatmul.mubr.bf16.gmra.mrb[0].mxu0 %v468
        %v520 = vpop.f32.mrb[0].mxu0
        %v521 = vadd.f32 %v454, %v520
        %v522 = vpop.f32.mrb[0].mxu0
        %v523 = vadd.f32 %v454, %v522
        %v524 = vpop.f32.mrb[0].mxu0
        %v525 = vpop.f32.mrb[0].mxu0
        %526 = vdwg.mxu0
        %527 = vst [vmem:[%s284] sm:$0xff] %v511
        %528 = vst [vmem:[%s284 + $0x8] sm:$0xff] %v513
        %529 = vst [vmem:[%s284 + $0x10] sm:$0xff] %v515
        %530 = vst [vmem:[%s284 + $0x18] sm:$0xff] %v517
        %531 = vst [vmem:[%s284 + $0x20] sm:$0x7] %v521
        %532 = vst [vmem:[%s284 + $0x28] sm:$0x7] %v523
        %s533 = sand.u32 %s183, 1
        %s534 = sand.u32 %s183, 1
        %s535 = smul.addr %s534, 48
        %s536 = scalar_lea.vmem [#allocation2], %s535
        // Predicated region
        $region49: #{_lambda_.6} parent=47 // pred_check
          %p537 = pneg %p193
        $region50: #{_lambda_.6} parent=47 // pred_check_branch
          %539 = sbr.rel (%p537) target = $region52
        $region51: #{_lambda_.6} parent=47 // pred_region
          %s540 = smul.u32 2, %s18
          %s541 = smul.addr %s540, 8
          %s542 = scalar_lea.vmem %s7, %s541
          // Predicated region
          $region53: #{_lambda_.6} parent=51 // pred_check
            _
          $region54: #{_lambda_.6} parent=51 // pred_check_branch
            %544 = sbr.rel (0) target = $region56
          $region55: #{_lambda_.6} parent=51 // pred_region
            // Predicated region
            $region57: #{_lambda_.6} parent=55 // pred_check
              _
            $region58: #{_lambda_.6} parent=55 // pred_check_branch
              %546 = sbr.rel (0) target = $region60
            $region59: #{_lambda_.6} parent=55 // pred_region
              loop: start=0, step=1, limit=1
              $region61: #{_lambda_.6} parent=59 // loop_pre_header
                _
              $region62: #{_lambda_.6} parent=59 // loop_header
                %s548 = sphi 0, %s552
                %p549 = scmp.ge.s32.totalorder %s548, 1
                %s553 = sphi %s536, %s536
                %s554 = sphi %s542, %s542
              $region63: #{_lambda_.6} parent=59 // loop_header_branch
                %551 = sbr.rel (%p549) target = $region67
              $region64: #{_lambda_.6} parent=59 // loop_body
                %v555 = vld [vmem:[%s553] sm:$0xff]
                %556 = vst [vmem:[%s554] sm:$0xff] %v555
                %v557 = vld [vmem:[%s553 + $0x8] sm:$0xff]
                %558 = vst [vmem:[%s554 + $0x8] sm:$0xff] %v557
                %v559 = vld [vmem:[%s553 + $0x10] sm:$0xff]
                %560 = vst [vmem:[%s554 + $0x20] sm:$0xff] %v559
                %v561 = vld [vmem:[%s553 + $0x18] sm:$0xff]
                %562 = vst [vmem:[%s554 + $0x28] sm:$0xff] %v561
                %v563 = vld [vmem:[%s553 + $0x20] sm:$0xff]
                %564 = vst [vmem:[%s554 + $0x40] sm:$0xff] %v563
                %v565 = vld [vmem:[%s553 + $0x28] sm:$0xff]
                %566 = vst [vmem:[%s554 + $0x48] sm:$0xff] %v565
              $region65: #{_lambda_.6} parent=59 // loop_footer
                %s552 = sadd.s32 1, %s548
              $region66: #{_lambda_.6} parent=59 // loop_footer_branch
                %547 = sbr.rel target = $region62
              $region67: #{_lambda_.6} parent=59 // loop_exit
                _
            $region60: #{_lambda_.6} parent=55 // pred_fallthru
              _
            // Predicated region
            $region68: #{_lambda_.6} parent=55 // pred_check
              _
            $region69: #{_lambda_.6} parent=55 // pred_check_branch
              %568 = sbr.rel target = $region71
            $region70: #{_lambda_.6} parent=55 // pred_region
              _
            $region71: #{_lambda_.6} parent=55 // pred_fallthru
              _
          $region56: #{_lambda_.6} parent=51 // pred_fallthru
            _
          %569 = vnop
        $region52: #{_lambda_.6} parent=47 // pred_fallthru
          _
      $region48: #{_lambda_.6} parent=5 // pred_fallthru
        _
      %p570 = scmp.le.s32.totalorder 2, %s13
      // Predicated region
      $region72: #{_lambda_.6} parent=5 // pred_check
        %p571 = pneg %p570
      $region73: #{_lambda_.6} parent=5 // pred_check_branch
        %573 = sbr.rel (%p571) target = $region75
      $region74: #{_lambda_.6} parent=5 // pred_region
        %s574 = ssub.s32 %s13, 2
        // Predicated region
        $region76: #{_lambda_.6} parent=74 // pred_check
          %p575 = pneg %p199
        $region77: #{_lambda_.6} parent=74 // pred_check_branch
          %577 = sbr.rel (%p575) target = $region79
        $region78: #{_lambda_.6} parent=74 // pred_region
          %s578 = sand.u32 %s184, 1
          %s579 = sand.u32 %s184, 1
          %s580 = smul.addr %s579, 48
          %s581 = scalar_lea.vmem [#allocation2], %s580
        $region79: #{_lambda_.6} parent=74 // pred_fallthru
          _
      $region75: #{_lambda_.6} parent=5 // pred_fallthru
        _
    $region6: #{_lambda_.6} parent=1 // loop_footer
      %s17 = sadd.s32 1, %s13
    $region7: #{_lambda_.6} parent=1 // loop_footer_branch
      %12 = sbr.rel target = $region3
    $region8: #{_lambda_.6} parent=1 // loop_exit
      _

</llo_original>
